<compile_context>
chip_gen: v7x
topology: tpu7x:2x2x1
jax: 0.10.0
libtpu: 0.0.40
codegen_flags: <defaults>
</compile_context>

<pallas_src>
import jax
import jax.numpy as jnp
from jax.experimental import pallas as pl
from jax.experimental.pallas import tpu as pltpu


# ------------------------------- fused kernel -------------------------------

def _make_kernel(C_in, C_out, H, W, KH, KW):
    WP = W + KW - 1          # padded row length (W + 2 for 3x3 / pad=1)
    PS = H * WP              # padded-flat spatial positions per channel

    def kernel(x_ref, wc_ref, bc_ref, w1_ref, b1_ref, w2_ref, b2_ref, o_ref):
        # ---- encoder stand-in: conv3x3(pad=1) + bias + ReLU -----------------
        # Every (kh, kw) tap of the conv is a plain contiguous lane slice of
        # the padded-flat input, so the conv is KH*KW accumulated
        # [C_out, C_in] @ [C_in, PS] matmuls with a lane-dense N (= PS) and no
        # in-kernel reshapes or gathers.
        acc = jnp.zeros((C_out, PS), jnp.float32)
        for kh in range(KH):
            for kw in range(KW):
                start = kh * WP + kw                       # static offset
                slab = x_ref[0, :, start:start + PS]       # [C_in, PS] bf16
                acc = acc + jnp.dot(wc_ref[kh * KW + kw], slab,
                                    preferred_element_type=jnp.float32)
        feat = jnp.maximum(acc + bc_ref[...], 0.0)         # [C_out, PS] f32
        feat = feat.astype(jnp.bfloat16)

        # ---- projection head: Linear(d_in,d_in) -> ReLU -> Linear(d_in,fd) --
        # w1 has been re-laid out to [C_out, PS, d_in] with zero rows at the
        # padded (garbage) spatial columns, so the NCHW flatten / transpose of
        # the old version disappears entirely.
        h = b1_ref[...]                                    # [1, d_in] f32
        for c in range(C_out):
            h = h + jnp.dot(feat[c:c + 1, :], w1_ref[c],
                            preferred_element_type=jnp.float32)
        h = jnp.maximum(h, 0.0).astype(jnp.bfloat16)       # [1, d_in]
        z = jnp.dot(h, w2_ref[...],
                    preferred_element_type=jnp.float32) + b2_ref[...]

        # ---- F.normalize(dim=1) (eps=1e-12): rsqrt -> EUP, no VALU divide ---
        ssq = jnp.sum(z * z, axis=1, keepdims=True)
        o_ref[0] = z * jax.lax.rsqrt(jnp.maximum(ssq, 1e-24))

    return kernel


# -------------------------- wrapper / layout prep ----------------------------

def prepare_params(params, C_out, H, W, KH, KW):
    """One-time (outside jit) re-layout of PyTorch-layout params for the kernel."""
    WP = W + KW - 1
    # conv weight [C_out, C_in, KH, KW] -> per-tap [KH*KW, C_out, C_in] (bf16)
    wc = jnp.transpose(params["conv_w"], (2, 3, 0, 1))
    wc = wc.reshape(KH * KW, C_out, -1).astype(jnp.bfloat16)
    bc = params["conv_b"].reshape(C_out, 1).astype(jnp.float32)
    # head weight 1: rows are NCHW-flatten (c, h, w) of the encoder feature;
    # re-index them to the kernel's padded-flat layout (c, h*WP + w) with zero
    # rows at the KW-1 garbage columns of each spatial row.
    d_out1 = params["w1"].shape[1]
    w1p = params["w1"].reshape(C_out, H, W, d_out1)
    w1p = jnp.pad(w1p, ((0, 0), (0, 0), (0, KW - 1), (0, 0)))
    w1p = w1p.reshape(C_out, H * WP, d_out1).astype(jnp.bfloat16)
    return {
        "wc": wc,
        "bc": bc,
        "w1p": w1p,
        "b1": params["b1"].reshape(1, -1).astype(jnp.float32),
        "w2": params["w2"].astype(jnp.bfloat16),
        "b2": params["b2"].reshape(1, -1).astype(jnp.float32),
    }


def build_supcon_forward(B, C_in, C_out, H, W, KH, KW, d_in, feat_dim):
    assert d_in == C_out * H * W, "head dim must match flattened encoder width"
    pad = (KH - 1) // 2
    HP, WP = H + KH - 1, W + KW - 1
    PS = H * WP
    FLAT = HP * WP + (KW - 1)      # +slack so every tap slice stays in bounds
    kernel = _make_kernel(C_in, C_out, H, W, KH, KW)

    def forward(x, kp):
        # Single cheap XLA layout pass on x (read once): zero-pad the spatial
        # dims, flatten them, append KW-1 slack zeros, cast to bf16.
        xp = jnp.pad(x, ((0, 0), (0, 0), (pad, pad), (pad, pad)))
        xf = jnp.pad(xp.reshape(B, C_in, HP * WP), ((0, 0), (0, 0), (0, KW - 1)))
        xf = xf.astype(jnp.bfloat16)

        out = pl.pallas_call(
            kernel,
            out_shape=jax.ShapeDtypeStruct((B, 1, feat_dim), jnp.float32),
            grid=(B,),
            in_specs=[
                pl.BlockSpec((1, C_in, FLAT), lambda b: (b, 0, 0)),         # x
                pl.BlockSpec((KH * KW, C_out, C_in), lambda b: (0, 0, 0)),  # conv w
                pl.BlockSpec((C_out, 1), lambda b: (0, 0)),                 # conv b
                pl.BlockSpec((C_out, PS, d_in), lambda b: (0, 0, 0)),       # w1 (padded)
                pl.BlockSpec((1, d_in), lambda b: (0, 0)),                  # b1
                pl.BlockSpec((d_in, feat_dim), lambda b: (0, 0)),           # w2
                pl.BlockSpec((1, feat_dim), lambda b: (0, 0)),              # b2
            ],
            out_specs=pl.BlockSpec((1, 1, feat_dim), lambda b: (b, 0, 0)),
            compiler_params=pltpu.CompilerParams(
                dimension_semantics=("parallel",)),
            # NOTE: VMEM footprint here is ~1.5 MiB (bf16 w1p dominates), far
            # under every generation's limit.  For large d_in, tile w1 along K
            # with a trailing "arbitrary" grid axis + f32 VMEM accumulator and
            # set vmem_limit_bytes explicitly (v7x only has 64 MiB / core).
        )(xf, kp["wc"], kp["bc"], kp["w1p"], kp["b1"], kp["w2"], kp["b2"])
        return out.reshape(B, feat_dim)

    return forward


# ---------------------------- plain-JAX reference ----------------------------

def reference_forward(x, params):
    """f32 XLA reference of the same forward (correctness cross-check)."""
    conv = jax.lax.conv_general_dilated(
        x, params["conv_w"], window_strides=(1, 1),
        padding=((1, 1), (1, 1)),
        dimension_numbers=("NCHW", "OIHW", "NCHW"))
    feat = jnp.maximum(conv + params["conv_b"][None, :, None, None], 0.0)
    feat = feat.reshape(x.shape[0], -1)                      # NCHW flatten
    h = jnp.maximum(feat @ params["w1"] + params["b1"], 0.0)
    z = h @ params["w2"] + params["b2"]
    n = jnp.linalg.norm(z, axis=1, keepdims=True)
    return z / jnp.maximum(n, 1e-12)


# ----------------------------------- main ------------------------------------

if __name__ == "__main__":
    B, C_in, H, W = 2, 4, 16, 16
    KH = KW = 3
    C_out = 2
    dim_in = C_out * H * W          # plays the role of model._to_linear (= 512)
    feat_dim = 128

    key = jax.random.PRNGKey(0)
    k = jax.random.split(key, 7)
    params = {
        "conv_w": 0.1 * jax.random.normal(k[0], (C_out, C_in, KH, KW), jnp.float32),
        "conv_b": 0.1 * jax.random.normal(k[1], (C_out,), jnp.float32),
        # Linear weights stored as [in, out] (transpose of PyTorch's [out, in]).
        "w1": jax.random.normal(k[2], (dim_in, dim_in), jnp.float32) / jnp.sqrt(dim_in),
        "b1": 0.01 * jax.random.normal(k[3], (dim_in,), jnp.float32),
        "w2": jax.random.normal(k[4], (dim_in, feat_dim), jnp.float32) / jnp.sqrt(dim_in),
        "b2": 0.01 * jax.random.normal(k[5], (feat_dim,), jnp.float32),
    }
    x = jax.random.normal(k[6], (B, C_in, H, W), jnp.float32)

    kparams = prepare_params(params, C_out, H, W, KH, KW)
    forward = jax.jit(build_supcon_forward(B, C_in, C_out, H, W, KH, KW,
                                           dim_in, feat_dim))
    out = jax.block_until_ready(forward(x, kparams))

    assert out.shape == (B, feat_dim)
    # rows are unit-norm after F.normalize(dim=1) (norm math runs in f32)
    norms = jnp.linalg.norm(out, axis=1)
    assert bool(jnp.all(jnp.abs(norms - 1.0) < 1e-3)), norms
    # cross-check against the plain-JAX f32 reference (tolerance covers the
    # bf16 matmul operands; accumulation is f32)
    ref = reference_forward(x, params)
    max_err = float(jnp.max(jnp.abs(out - ref)))
    assert max_err < 2e-2, f"max abs err vs f32 reference: {max_err}"
    print("KERNEL_OK")
</pallas_src>

<mosaic_0001>
module attributes {stable_mosaic.version = 11 : i64} {
  func.func @kernel(%arg0: i32, %arg1: memref<1x4x326xbf16, #tpu.memory_space<vmem>>, %arg2: memref<9x2x4xbf16, #tpu.memory_space<vmem>>, %arg3: memref<2x1xf32, #tpu.memory_space<vmem>>, %arg4: memref<2x288x512xbf16, #tpu.memory_space<vmem>>, %arg5: memref<1x512xf32, #tpu.memory_space<vmem>>, %arg6: memref<512x128xbf16, #tpu.memory_space<vmem>>, %arg7: memref<1x128xf32, #tpu.memory_space<vmem>>, %arg8: memref<1x1x128xf32, #tpu.memory_space<vmem>>) attributes {dimension_semantics = [#tpu.dimension_semantics<parallel>], iteration_bounds = array<i64: 2>, scalar_prefetch = 0 : i64, scratch_operands = 0 : i64, tpu.core_type = #tpu.core_type<tc>, window_params = [{transform_indices = @transform_0, window_bounds = array<i64: 1, 4, 326>}, {pipeline_mode = #tpu.pipeline_mode<synchronous>, transform_indices = @transform_1, window_bounds = array<i64: 9, 2, 4>}, {pipeline_mode = #tpu.pipeline_mode<synchronous>, transform_indices = @transform_2, window_bounds = array<i64: 2, 1>}, {pipeline_mode = #tpu.pipeline_mode<synchronous>, transform_indices = @transform_3, window_bounds = array<i64: 2, 288, 512>}, {pipeline_mode = #tpu.pipeline_mode<synchronous>, transform_indices = @transform_4, window_bounds = array<i64: 1, 512>}, {pipeline_mode = #tpu.pipeline_mode<synchronous>, transform_indices = @transform_5, window_bounds = array<i64: 512, 128>}, {pipeline_mode = #tpu.pipeline_mode<synchronous>, transform_indices = @transform_6, window_bounds = array<i64: 1, 128>}, {transform_indices = @transform_7, window_bounds = array<i64: 1, 1, 128>}]} {
    %cst = arith.constant 0.000000e+00 : f32
    %0 = vector.broadcast %cst : f32 to vector<2x288xf32>
    %c0 = arith.constant 0 : index
    %c0_0 = arith.constant 0 : index
    %c0_1 = arith.constant 0 : index
    %1 = vector.load %arg1[%c0, %c0_0, %c0_1] : memref<1x4x326xbf16, #tpu.memory_space<vmem>>, vector<1x4x288xbf16>
    %2 = vector.shape_cast %1 : vector<1x4x288xbf16> to vector<4x288xbf16>
    %c0_2 = arith.constant 0 : index
    %c0_3 = arith.constant 0 : index
    %c0_4 = arith.constant 0 : index
    %3 = vector.load %arg2[%c0_2, %c0_3, %c0_4] : memref<9x2x4xbf16, #tpu.memory_space<vmem>>, vector<1x2x4xbf16>
    %4 = vector.shape_cast %3 : vector<1x2x4xbf16> to vector<2x4xbf16>
    %cst_5 = arith.constant dense<0.000000e+00> : vector<2x288xf32>
    %5 = tpu.matmul %4, %2, %cst_5 {dimension_numbers = #tpu.dot_dimension_numbers<[1], [0], [0], [1], [0, 0, 1, 1], [], []>} : vector<2x4xbf16>, vector<4x288xbf16>, vector<2x288xf32> -> vector<2x288xf32>
    %6 = arith.addf %0, %5 : vector<2x288xf32>
    %c0_6 = arith.constant 0 : index
    %c0_7 = arith.constant 0 : index
    %c1 = arith.constant 1 : index
    %7 = vector.load %arg1[%c0_6, %c0_7, %c1] : memref<1x4x326xbf16, #tpu.memory_space<vmem>>, vector<1x4x288xbf16>
    %8 = vector.shape_cast %7 : vector<1x4x288xbf16> to vector<4x288xbf16>
    %c1_8 = arith.constant 1 : index
    %c0_9 = arith.constant 0 : index
    %c0_10 = arith.constant 0 : index
    %9 = vector.load %arg2[%c1_8, %c0_9, %c0_10] : memref<9x2x4xbf16, #tpu.memory_space<vmem>>, vector<1x2x4xbf16>
    %10 = vector.shape_cast %9 : vector<1x2x4xbf16> to vector<2x4xbf16>
    %cst_11 = arith.constant dense<0.000000e+00> : vector<2x288xf32>
    %11 = tpu.matmul %10, %8, %cst_11 {dimension_numbers = #tpu.dot_dimension_numbers<[1], [0], [0], [1], [0, 0, 1, 1], [], []>} : vector<2x4xbf16>, vector<4x288xbf16>, vector<2x288xf32> -> vector<2x288xf32>
    %12 = arith.addf %6, %11 : vector<2x288xf32>
    %c0_12 = arith.constant 0 : index
    %c0_13 = arith.constant 0 : index
    %c2 = arith.constant 2 : index
    %13 = vector.load %arg1[%c0_12, %c0_13, %c2] : memref<1x4x326xbf16, #tpu.memory_space<vmem>>, vector<1x4x288xbf16>
    %14 = vector.shape_cast %13 : vector<1x4x288xbf16> to vector<4x288xbf16>
    %c2_14 = arith.constant 2 : index
    %c0_15 = arith.constant 0 : index
    %c0_16 = arith.constant 0 : index
    %15 = vector.load %arg2[%c2_14, %c0_15, %c0_16] : memref<9x2x4xbf16, #tpu.memory_space<vmem>>, vector<1x2x4xbf16>
    %16 = vector.shape_cast %15 : vector<1x2x4xbf16> to vector<2x4xbf16>
    %cst_17 = arith.constant dense<0.000000e+00> : vector<2x288xf32>
    %17 = tpu.matmul %16, %14, %cst_17 {dimension_numbers = #tpu.dot_dimension_numbers<[1], [0], [0], [1], [0, 0, 1, 1], [], []>} : vector<2x4xbf16>, vector<4x288xbf16>, vector<2x288xf32> -> vector<2x288xf32>
    %18 = arith.addf %12, %17 : vector<2x288xf32>
    %c0_18 = arith.constant 0 : index
    %c0_19 = arith.constant 0 : index
    %c18 = arith.constant 18 : index
    %19 = vector.load %arg1[%c0_18, %c0_19, %c18] : memref<1x4x326xbf16, #tpu.memory_space<vmem>>, vector<1x4x288xbf16>
    %20 = vector.shape_cast %19 : vector<1x4x288xbf16> to vector<4x288xbf16>
    %c3 = arith.constant 3 : index
    %c0_20 = arith.constant 0 : index
    %c0_21 = arith.constant 0 : index
    %21 = vector.load %arg2[%c3, %c0_20, %c0_21] : memref<9x2x4xbf16, #tpu.memory_space<vmem>>, vector<1x2x4xbf16>
    %22 = vector.shape_cast %21 : vector<1x2x4xbf16> to vector<2x4xbf16>
    %cst_22 = arith.constant dense<0.000000e+00> : vector<2x288xf32>
    %23 = tpu.matmul %22, %20, %cst_22 {dimension_numbers = #tpu.dot_dimension_numbers<[1], [0], [0], [1], [0, 0, 1, 1], [], []>} : vector<2x4xbf16>, vector<4x288xbf16>, vector<2x288xf32> -> vector<2x288xf32>
    %24 = arith.addf %18, %23 : vector<2x288xf32>
    %c0_23 = arith.constant 0 : index
    %c0_24 = arith.constant 0 : index
    %c19 = arith.constant 19 : index
    %25 = vector.load %arg1[%c0_23, %c0_24, %c19] : memref<1x4x326xbf16, #tpu.memory_space<vmem>>, vector<1x4x288xbf16>
    %26 = vector.shape_cast %25 : vector<1x4x288xbf16> to vector<4x288xbf16>
    %c4 = arith.constant 4 : index
    %c0_25 = arith.constant 0 : index
    %c0_26 = arith.constant 0 : index
    %27 = vector.load %arg2[%c4, %c0_25, %c0_26] : memref<9x2x4xbf16, #tpu.memory_space<vmem>>, vector<1x2x4xbf16>
    %28 = vector.shape_cast %27 : vector<1x2x4xbf16> to vector<2x4xbf16>
    %cst_27 = arith.constant dense<0.000000e+00> : vector<2x288xf32>
    %29 = tpu.matmul %28, %26, %cst_27 {dimension_numbers = #tpu.dot_dimension_numbers<[1], [0], [0], [1], [0, 0, 1, 1], [], []>} : vector<2x4xbf16>, vector<4x288xbf16>, vector<2x288xf32> -> vector<2x288xf32>
    %30 = arith.addf %24, %29 : vector<2x288xf32>
    %c0_28 = arith.constant 0 : index
    %c0_29 = arith.constant 0 : index
    %c20 = arith.constant 20 : index
    %31 = vector.load %arg1[%c0_28, %c0_29, %c20] : memref<1x4x326xbf16, #tpu.memory_space<vmem>>, vector<1x4x288xbf16>
    %32 = vector.shape_cast %31 : vector<1x4x288xbf16> to vector<4x288xbf16>
    %c5 = arith.constant 5 : index
    %c0_30 = arith.constant 0 : index
    %c0_31 = arith.constant 0 : index
    %33 = vector.load %arg2[%c5, %c0_30, %c0_31] : memref<9x2x4xbf16, #tpu.memory_space<vmem>>, vector<1x2x4xbf16>
    %34 = vector.shape_cast %33 : vector<1x2x4xbf16> to vector<2x4xbf16>
    %cst_32 = arith.constant dense<0.000000e+00> : vector<2x288xf32>
    %35 = tpu.matmul %34, %32, %cst_32 {dimension_numbers = #tpu.dot_dimension_numbers<[1], [0], [0], [1], [0, 0, 1, 1], [], []>} : vector<2x4xbf16>, vector<4x288xbf16>, vector<2x288xf32> -> vector<2x288xf32>
    %36 = arith.addf %30, %35 : vector<2x288xf32>
    %c0_33 = arith.constant 0 : index
    %c0_34 = arith.constant 0 : index
    %c36 = arith.constant 36 : index
    %37 = vector.load %arg1[%c0_33, %c0_34, %c36] : memref<1x4x326xbf16, #tpu.memory_space<vmem>>, vector<1x4x288xbf16>
    %38 = vector.shape_cast %37 : vector<1x4x288xbf16> to vector<4x288xbf16>
    %c6 = arith.constant 6 : index
    %c0_35 = arith.constant 0 : index
    %c0_36 = arith.constant 0 : index
    %39 = vector.load %arg2[%c6, %c0_35, %c0_36] : memref<9x2x4xbf16, #tpu.memory_space<vmem>>, vector<1x2x4xbf16>
    %40 = vector.shape_cast %39 : vector<1x2x4xbf16> to vector<2x4xbf16>
    %cst_37 = arith.constant dense<0.000000e+00> : vector<2x288xf32>
    %41 = tpu.matmul %40, %38, %cst_37 {dimension_numbers = #tpu.dot_dimension_numbers<[1], [0], [0], [1], [0, 0, 1, 1], [], []>} : vector<2x4xbf16>, vector<4x288xbf16>, vector<2x288xf32> -> vector<2x288xf32>
    %42 = arith.addf %36, %41 : vector<2x288xf32>
    %c0_38 = arith.constant 0 : index
    %c0_39 = arith.constant 0 : index
    %c37 = arith.constant 37 : index
    %43 = vector.load %arg1[%c0_38, %c0_39, %c37] : memref<1x4x326xbf16, #tpu.memory_space<vmem>>, vector<1x4x288xbf16>
    %44 = vector.shape_cast %43 : vector<1x4x288xbf16> to vector<4x288xbf16>
    %c7 = arith.constant 7 : index
    %c0_40 = arith.constant 0 : index
    %c0_41 = arith.constant 0 : index
    %45 = vector.load %arg2[%c7, %c0_40, %c0_41] : memref<9x2x4xbf16, #tpu.memory_space<vmem>>, vector<1x2x4xbf16>
    %46 = vector.shape_cast %45 : vector<1x2x4xbf16> to vector<2x4xbf16>
    %cst_42 = arith.constant dense<0.000000e+00> : vector<2x288xf32>
    %47 = tpu.matmul %46, %44, %cst_42 {dimension_numbers = #tpu.dot_dimension_numbers<[1], [0], [0], [1], [0, 0, 1, 1], [], []>} : vector<2x4xbf16>, vector<4x288xbf16>, vector<2x288xf32> -> vector<2x288xf32>
    %48 = arith.addf %42, %47 : vector<2x288xf32>
    %c0_43 = arith.constant 0 : index
    %c0_44 = arith.constant 0 : index
    %c38 = arith.constant 38 : index
    %49 = vector.load %arg1[%c0_43, %c0_44, %c38] : memref<1x4x326xbf16, #tpu.memory_space<vmem>>, vector<1x4x288xbf16>
    %50 = vector.shape_cast %49 : vector<1x4x288xbf16> to vector<4x288xbf16>
    %c8 = arith.constant 8 : index
    %c0_45 = arith.constant 0 : index
    %c0_46 = arith.constant 0 : index
    %51 = vector.load %arg2[%c8, %c0_45, %c0_46] : memref<9x2x4xbf16, #tpu.memory_space<vmem>>, vector<1x2x4xbf16>
    %52 = vector.shape_cast %51 : vector<1x2x4xbf16> to vector<2x4xbf16>
    %cst_47 = arith.constant dense<0.000000e+00> : vector<2x288xf32>
    %53 = tpu.matmul %52, %50, %cst_47 {dimension_numbers = #tpu.dot_dimension_numbers<[1], [0], [0], [1], [0, 0, 1, 1], [], []>} : vector<2x4xbf16>, vector<4x288xbf16>, vector<2x288xf32> -> vector<2x288xf32>
    %54 = arith.addf %48, %53 : vector<2x288xf32>
    %c0_48 = arith.constant 0 : index
    %c0_49 = arith.constant 0 : index
    %55 = vector.load %arg3[%c0_48, %c0_49] : memref<2x1xf32, #tpu.memory_space<vmem>>, vector<2x1xf32>
    %56 = vector.broadcast %55 : vector<2x1xf32> to vector<2x288xf32>
    %57 = arith.addf %54, %56 : vector<2x288xf32>
    %cst_50 = arith.constant 0.000000e+00 : f32
    %58 = vector.broadcast %cst_50 : f32 to vector<2x288xf32>
    %59 = arith.maximumf %57, %58 : vector<2x288xf32>
    %60 = arith.truncf %59 : vector<2x288xf32> to vector<2x288xbf16>
    %c0_51 = arith.constant 0 : index
    %c0_52 = arith.constant 0 : index
    %61 = vector.load %arg5[%c0_51, %c0_52] : memref<1x512xf32, #tpu.memory_space<vmem>>, vector<1x512xf32>
    %62 = vector.extract_strided_slice %60 {offsets = [0, 0], sizes = [1, 288], strides = [1, 1]} : vector<2x288xbf16> to vector<1x288xbf16>
    %c0_53 = arith.constant 0 : index
    %c0_54 = arith.constant 0 : index
    %c0_55 = arith.constant 0 : index
    %63 = vector.load %arg4[%c0_53, %c0_54, %c0_55] : memref<2x288x512xbf16, #tpu.memory_space<vmem>>, vector<1x288x512xbf16>
    %64 = vector.shape_cast %63 : vector<1x288x512xbf16> to vector<288x512xbf16>
    %cst_56 = arith.constant dense<0.000000e+00> : vector<1x512xf32>
    %65 = tpu.matmul %62, %64, %cst_56 {dimension_numbers = #tpu.dot_dimension_numbers<[1], [0], [0], [1], [0, 0, 1, 1], [], []>} : vector<1x288xbf16>, vector<288x512xbf16>, vector<1x512xf32> -> vector<1x512xf32>
    %66 = arith.addf %61, %65 : vector<1x512xf32>
    %67 = vector.extract_strided_slice %60 {offsets = [1, 0], sizes = [1, 288], strides = [1, 1]} : vector<2x288xbf16> to vector<1x288xbf16>
    %c1_57 = arith.constant 1 : index
    %c0_58 = arith.constant 0 : index
    %c0_59 = arith.constant 0 : index
    %68 = vector.load %arg4[%c1_57, %c0_58, %c0_59] : memref<2x288x512xbf16, #tpu.memory_space<vmem>>, vector<1x288x512xbf16>
    %69 = vector.shape_cast %68 : vector<1x288x512xbf16> to vector<288x512xbf16>
    %cst_60 = arith.constant dense<0.000000e+00> : vector<1x512xf32>
    %70 = tpu.matmul %67, %69, %cst_60 {dimension_numbers = #tpu.dot_dimension_numbers<[1], [0], [0], [1], [0, 0, 1, 1], [], []>} : vector<1x288xbf16>, vector<288x512xbf16>, vector<1x512xf32> -> vector<1x512xf32>
    %71 = arith.addf %66, %70 : vector<1x512xf32>
    %cst_61 = arith.constant 0.000000e+00 : f32
    %72 = vector.broadcast %cst_61 : f32 to vector<1x512xf32>
    %73 = arith.maximumf %71, %72 : vector<1x512xf32>
    %74 = arith.truncf %73 : vector<1x512xf32> to vector<1x512xbf16>
    %c0_62 = arith.constant 0 : index
    %c0_63 = arith.constant 0 : index
    %75 = vector.load %arg6[%c0_62, %c0_63] : memref<512x128xbf16, #tpu.memory_space<vmem>>, vector<512x128xbf16>
    %cst_64 = arith.constant dense<0.000000e+00> : vector<1x128xf32>
    %76 = tpu.matmul %74, %75, %cst_64 {dimension_numbers = #tpu.dot_dimension_numbers<[1], [0], [0], [1], [0, 0, 1, 1], [], []>} : vector<1x512xbf16>, vector<512x128xbf16>, vector<1x128xf32> -> vector<1x128xf32>
    %c0_65 = arith.constant 0 : index
    %c0_66 = arith.constant 0 : index
    %77 = vector.load %arg7[%c0_65, %c0_66] : memref<1x128xf32, #tpu.memory_space<vmem>>, vector<1x128xf32>
    %78 = arith.addf %76, %77 : vector<1x128xf32>
    %79 = arith.mulf %78, %78 : vector<1x128xf32>
    %cst_67 = arith.constant dense<0.000000e+00> : vector<1xf32>
    %80 = vector.multi_reduction <add>, %79, %cst_67 [1] : vector<1x128xf32> to vector<1xf32>
    %81 = vector.shape_cast %80 : vector<1xf32> to vector<1x1xf32>
    %cst_68 = arith.constant 1.000000e-24 : f32
    %82 = vector.broadcast %cst_68 : f32 to vector<1x1xf32>
    %83 = arith.maximumf %81, %82 : vector<1x1xf32>
    %84 = math.rsqrt %83 : vector<1x1xf32>
    %85 = vector.broadcast %84 : vector<1x1xf32> to vector<1x128xf32>
    %86 = arith.mulf %78, %85 : vector<1x128xf32>
    %c0_69 = arith.constant 0 : index
    %c0_70 = arith.constant 0 : index
    %c0_71 = arith.constant 0 : index
    %87 = vector.load %arg8[%c0_69, %c0_70, %c0_71] : memref<1x1x128xf32, #tpu.memory_space<vmem>>, vector<1x1x128xf32>
    %88 = vector.shape_cast %87 : vector<1x1x128xf32> to vector<1x128xf32>
    %89 = vector.shape_cast %86 : vector<1x128xf32> to vector<1x1x128xf32>
    tpu.vector_store %arg8[%c0_69, %c0_70, %c0_71], %89 {strides = array<i32>} : memref<1x1x128xf32, #tpu.memory_space<vmem>>, vector<1x1x128xf32>,
    return
  }
  func.func @transform_0(%arg0: i32) -> (i32, i32, i32) {
    %c0_i32 = arith.constant 0 : i32
    %c0_i32_0 = arith.constant 0 : i32
    %c0_i32_1 = arith.constant 0 : i32
    return %arg0, %c0_i32, %c0_i32_0 : i32, i32, i32
  }
  func.func @transform_1(%arg0: i32) -> (i32, i32, i32) {
    %c0_i32 = arith.constant 0 : i32
    %c0_i32_0 = arith.constant 0 : i32
    %c0_i32_1 = arith.constant 0 : i32
    %c0_i32_2 = arith.constant 0 : i32
    return %c0_i32, %c0_i32_0, %c0_i32_1 : i32, i32, i32
  }
  func.func @transform_2(%arg0: i32) -> (i32, i32) {
    %c0_i32 = arith.constant 0 : i32
    %c0_i32_0 = arith.constant 0 : i32
    %c0_i32_1 = arith.constant 0 : i32
    return %c0_i32, %c0_i32_0 : i32, i32
  }
  func.func @transform_3(%arg0: i32) -> (i32, i32, i32) {
    %c0_i32 = arith.constant 0 : i32
    %c0_i32_0 = arith.constant 0 : i32
    %c0_i32_1 = arith.constant 0 : i32
    %c0_i32_2 = arith.constant 0 : i32
    return %c0_i32, %c0_i32_0, %c0_i32_1 : i32, i32, i32
  }
  func.func @transform_4(%arg0: i32) -> (i32, i32) {
    %c0_i32 = arith.constant 0 : i32
    %c0_i32_0 = arith.constant 0 : i32
    %c0_i32_1 = arith.constant 0 : i32
    return %c0_i32, %c0_i32_0 : i32, i32
  }
  func.func @transform_5(%arg0: i32) -> (i32, i32) {
    %c0_i32 = arith.constant 0 : i32
    %c0_i32_0 = arith.constant 0 : i32
    %c0_i32_1 = arith.constant 0 : i32
    return %c0_i32, %c0_i32_0 : i32, i32
  }
  func.func @transform_6(%arg0: i32) -> (i32, i32) {
    %c0_i32 = arith.constant 0 : i32
    %c0_i32_0 = arith.constant 0 : i32
    %c0_i32_1 = arith.constant 0 : i32
    return %c0_i32, %c0_i32_0 : i32, i32
  }
  func.func @transform_7(%arg0: i32) -> (i32, i32, i32) {
    %c0_i32 = arith.constant 0 : i32
    %c0_i32_0 = arith.constant 0 : i32
    %c0_i32_1 = arith.constant 0 : i32
    return %arg0, %c0_i32, %c0_i32_0 : i32, i32, i32
  }
}

</mosaic_0001>

<llo_original>
// kernel: forward.1
$region0: #{forward.1}
  #allocation0 [shape = 'u32[]', space=smem, size = 0x4, offset = 0x4, fixed_abs, tag = 'smem constant byte address 0x4 - core index']
  #allocation1 [shape = 'u32[144,128]{1,0:T(1,128)}', space=vmem, size = 0x12000, scoped, tag = 'internal scratch']
  %s0 = inlined_call_operand.vmem [shape: bf16[2,4,326], index: 0, kind: input, shape index: {}]
  %s1 = inlined_call_operand.vmem [shape: bf16[9,2,4], index: 1, kind: input, shape index: {}]
  %s2 = inlined_call_operand.vmem [shape: f32[2,1], index: 2, kind: input, shape index: {}]
  %s3 = inlined_call_operand.hbm [shape: bf16[2,288,512], index: 3, kind: input, shape index: {}]
  %s4 = inlined_call_operand.vmem [shape: f32[1,512], index: 4, kind: input, shape index: {}]
  %s5 = inlined_call_operand.vmem [shape: bf16[512,128], index: 5, kind: input, shape index: {}]
  %s6 = inlined_call_operand.vmem [shape: f32[1,128], index: 6, kind: input, shape index: {}]
  %s7 = inlined_call_operand.hbm [shape: f32[2,1,128], index: 7, kind: output, shape index: {}]
  %s8 = sld [smem:[#allocation0]]
  $region65: #{forward.1} parent=0
    _
  %s10 = ssub.s32 1, %s8
  %s11 = scalar_select 0, %s10, %s8
  $region1: #{forward.1} parent=0
    #allocation2 [shape = 'u8[589824]{0}', space=vmem, size = 0x90000, scoped, tag = 'input window, operand 3, single buffered']
    #allocation3 [shape = 's32[2]{0}', space=sflag, size = 0x8, scoped, tag = 'scoped memory for forward.1']
    #allocation4 [shape = 's32[2]{0}', space=sflag, size = 0x8, scoped, tag = 'scoped memory for forward.1']
    #allocation5 [shape = 'u8[1024]{0}', space=vmem, size = 0x400, scoped, tag = 'output window, operand 0']
    %12 = vsyncpa [#allocation3], 0
    %13 = vsyncpa [#allocation4], 0
    %s14 = scalar_lea.sflag [#allocation4], 1
    %15 = vsyncpa %s14, 0
    loop: start=0, step=1, limit=4
    $region2: #{forward.1} parent=1 // loop_pre_header
      _
    $region3: #{forward.1} parent=1 // loop_header
      %s17 = sphi 0, %s21
      %p18 = scmp.ge.s32.totalorder %s17, 4
      %s27 = sphi 0, %s29
      %s30 = sphi 0, %s27
      %s31 = sphi 0, %s30
      %s47 = sphi 0, %s31
      %s51 = sphi 0, %s51
      %s53 = sphi 0, %s51
      %s54 = sphi 0, %s53
      %s68 = sphi 0, %s54
      %s72 = sphi 0, %s72
      %s74 = sphi 0, %s72
      %s75 = sphi 0, %s74
      %s89 = sphi 0, %s75
      %s93 = sphi 0, %s93
      %s95 = sphi 0, %s93
      %s96 = sphi 0, %s95
      %s110 = sphi 0, %s96
      %s114 = sphi 0, %s114
      %s116 = sphi 0, %s114
      %s117 = sphi 0, %s116
      %s131 = sphi 0, %s117
      %s135 = sphi 0, %s135
      %s137 = sphi 0, %s135
      %s138 = sphi 0, %s137
      %s152 = sphi 0, %s138
      %s156 = sphi 0, %s156
      %s158 = sphi 0, %s156
      %s159 = sphi 0, %s158
      %s173 = sphi 0, %s159
      %s179 = sphi 0, %s181
      %s182 = sphi 0, %s179
      %s183 = sphi 0, %s182
      %s199 = sphi 0, %s183
    $region4: #{forward.1} parent=1 // loop_header_branch
      %20 = sbr.rel (%p18) target = $region8
    $region5: #{forward.1} parent=1 // loop_body
      %s22 = ssub.s32 %s17, 1
      %s23 = ssub.s32 %s17, 2
      %s24 = sadd.s32 %s17, 1
      %s25 = ssub.s32 %s17, %s24
      %p26 = scmp.eq.s32.totalorder %s25, 0
      %s28 = sadd.s32 %s27, 1
      %s29 = scalar_select %p26, %s27, %s28
      %p32 = pneg %p26
      %p33 = scmp.eq.s32.totalorder %s17, 1
      %p34 = por %p32, %p33
      %p35 = scmp.ne.s32.totalorder %s27, %s30
      %p36 = scmp.eq.s32.totalorder %s17, 0
      %p37 = por %p35, %p36
      %p38 = scmp.ne.s32.totalorder %s27, %s30
      %p39 = scmp.eq.s32.totalorder %s22, 1
      %p40 = por %p38, %p39
      %p41 = scmp.ne.s32.totalorder %s30, %s31
      %p42 = scmp.eq.s32.totalorder %s22, 0
      %p43 = por %p41, %p42
      %p44 = scmp.ne.s32.totalorder %s30, %s31
      %p45 = scmp.eq.s32.totalorder %s23, 1
      %p46 = por %p44, %p45
      %p48 = scmp.ne.s32.totalorder %s31, %s47
      %p49 = scmp.eq.s32.totalorder %s23, 0
      %p50 = por %p48, %p49
      %s52 = sadd.s32 %s51, 1
      %p55 = scmp.eq.s32.totalorder %s17, 1
      %p56 = scmp.ne.s32.totalorder %s51, %s53
      %p57 = scmp.eq.s32.totalorder %s17, 0
      %p58 = por %p56, %p57
      %p59 = scmp.ne.s32.totalorder %s51, %s53
      %p60 = scmp.eq.s32.totalorder %s22, 1
      %p61 = por %p59, %p60
      %p62 = scmp.ne.s32.totalorder %s53, %s54
      %p63 = scmp.eq.s32.totalorder %s22, 0
      %p64 = por %p62, %p63
      %p65 = scmp.ne.s32.totalorder %s53, %s54
      %p66 = scmp.eq.s32.totalorder %s23, 1
      %p67 = por %p65, %p66
      %p69 = scmp.ne.s32.totalorder %s54, %s68
      %p70 = scmp.eq.s32.totalorder %s23, 0
      %p71 = por %p69, %p70
      %s73 = sadd.s32 %s72, 1
      %p76 = scmp.eq.s32.totalorder %s17, 1
      %p77 = scmp.ne.s32.totalorder %s72, %s74
      %p78 = scmp.eq.s32.totalorder %s17, 0
      %p79 = por %p77, %p78
      %p80 = scmp.ne.s32.totalorder %s72, %s74
      %p81 = scmp.eq.s32.totalorder %s22, 1
      %p82 = por %p80, %p81
      %p83 = scmp.ne.s32.totalorder %s74, %s75
      %p84 = scmp.eq.s32.totalorder %s22, 0
      %p85 = por %p83, %p84
      %p86 = scmp.ne.s32.totalorder %s74, %s75
      %p87 = scmp.eq.s32.totalorder %s23, 1
      %p88 = por %p86, %p87
      %p90 = scmp.ne.s32.totalorder %s75, %s89
      %p91 = scmp.eq.s32.totalorder %s23, 0
      %p92 = por %p90, %p91
      %s94 = sadd.s32 %s93, 1
      %p97 = scmp.eq.s32.totalorder %s17, 1
      %p98 = scmp.ne.s32.totalorder %s93, %s95
      %p99 = scmp.eq.s32.totalorder %s17, 0
      %p100 = por %p98, %p99
      %p101 = scmp.ne.s32.totalorder %s93, %s95
      %p102 = scmp.eq.s32.totalorder %s22, 1
      %p103 = por %p101, %p102
      %p104 = scmp.ne.s32.totalorder %s95, %s96
      %p105 = scmp.eq.s32.totalorder %s22, 0
      %p106 = por %p104, %p105
      %p107 = scmp.ne.s32.totalorder %s95, %s96
      %p108 = scmp.eq.s32.totalorder %s23, 1
      %p109 = por %p107, %p108
      %p111 = scmp.ne.s32.totalorder %s96, %s110
      %p112 = scmp.eq.s32.totalorder %s23, 0
      %p113 = por %p111, %p112
      %s115 = sadd.s32 %s114, 1
      %p118 = scmp.eq.s32.totalorder %s17, 1
      %p119 = scmp.ne.s32.totalorder %s114, %s116
      %p120 = scmp.eq.s32.totalorder %s17, 0
      %p121 = por %p119, %p120
      %p122 = scmp.ne.s32.totalorder %s114, %s116
      %p123 = scmp.eq.s32.totalorder %s22, 1
      %p124 = por %p122, %p123
      %p125 = scmp.ne.s32.totalorder %s116, %s117
      %p126 = scmp.eq.s32.totalorder %s22, 0
      %p127 = por %p125, %p126
      %p128 = scmp.ne.s32.totalorder %s116, %s117
      %p129 = scmp.eq.s32.totalorder %s23, 1
      %p130 = por %p128, %p129
      %p132 = scmp.ne.s32.totalorder %s117, %s131
      %p133 = scmp.eq.s32.totalorder %s23, 0
      %p134 = por %p132, %p133
      %s136 = sadd.s32 %s135, 1
      %p139 = scmp.eq.s32.totalorder %s17, 1
      %p140 = scmp.ne.s32.totalorder %s135, %s137
      %p141 = scmp.eq.s32.totalorder %s17, 0
      %p142 = por %p140, %p141
      %p143 = scmp.ne.s32.totalorder %s135, %s137
      %p144 = scmp.eq.s32.totalorder %s22, 1
      %p145 = por %p143, %p144
      %p146 = scmp.ne.s32.totalorder %s137, %s138
      %p147 = scmp.eq.s32.totalorder %s22, 0
      %p148 = por %p146, %p147
      %p149 = scmp.ne.s32.totalorder %s137, %s138
      %p150 = scmp.eq.s32.totalorder %s23, 1
      %p151 = por %p149, %p150
      %p153 = scmp.ne.s32.totalorder %s138, %s152
      %p154 = scmp.eq.s32.totalorder %s23, 0
      %p155 = por %p153, %p154
      %s157 = sadd.s32 %s156, 1
      %p160 = scmp.eq.s32.totalorder %s17, 1
      %p161 = scmp.ne.s32.totalorder %s156, %s158
      %p162 = scmp.eq.s32.totalorder %s17, 0
      %p163 = por %p161, %p162
      %p164 = scmp.ne.s32.totalorder %s156, %s158
      %p165 = scmp.eq.s32.totalorder %s22, 1
      %p166 = por %p164, %p165
      %p167 = scmp.ne.s32.totalorder %s158, %s159
      %p168 = scmp.eq.s32.totalorder %s22, 0
      %p169 = por %p167, %p168
      %p170 = scmp.ne.s32.totalorder %s158, %s159
      %p171 = scmp.eq.s32.totalorder %s23, 1
      %p172 = por %p170, %p171
      %p174 = scmp.ne.s32.totalorder %s159, %s173
      %p175 = scmp.eq.s32.totalorder %s23, 0
      %p176 = por %p174, %p175
      %s177 = ssub.s32 %s17, %s24
      %p178 = scmp.eq.s32.totalorder %s177, 0
      %s180 = sadd.s32 %s179, 1
      %s181 = scalar_select %p178, %s179, %s180
      %p184 = pneg %p178
      %p185 = scmp.eq.s32.totalorder %s17, 1
      %p186 = por %p184, %p185
      %p187 = scmp.ne.s32.totalorder %s179, %s182
      %p188 = scmp.eq.s32.totalorder %s17, 0
      %p189 = por %p187, %p188
      %p190 = scmp.ne.s32.totalorder %s179, %s182
      %p191 = scmp.eq.s32.totalorder %s22, 1
      %p192 = por %p190, %p191
      %p193 = scmp.ne.s32.totalorder %s182, %s183
      %p194 = scmp.eq.s32.totalorder %s22, 0
      %p195 = por %p193, %p194
      %p196 = scmp.ne.s32.totalorder %s182, %s183
      %p197 = scmp.eq.s32.totalorder %s23, 1
      %p198 = por %p196, %p197
      %p200 = scmp.ne.s32.totalorder %s183, %s199
      %p201 = scmp.eq.s32.totalorder %s23, 0
      %p202 = por %p200, %p201
      %p203 = scmp.le.s32.totalorder 1, %s17
      %p204 = scmp.lt.s32.totalorder %s17, 3
      %p205 = pnand %p203, %p204
      %p206 = pneg %p205
      // Predicated region
      $region9: #{forward.1} parent=5 // pred_check
        _
      $region10: #{forward.1} parent=5 // pred_check_branch
        %208 = sbr.rel (%p205) target = $region12
      $region11: #{forward.1} parent=5 // pred_region
        %s209 = ssub.s32 %s17, 1
        // Predicated region
        $region13: #{forward.1} parent=11 // pred_check
          %p210 = pneg %p64
        $region14: #{forward.1} parent=11 // pred_check_branch
          %212 = sbr.rel (%p210) target = $region16
        $region15: #{forward.1} parent=11 // pred_region
          _
        $region16: #{forward.1} parent=11 // pred_fallthru
          _
        // Predicated region
        $region17: #{forward.1} parent=11 // pred_check
          %p213 = pneg %p85
        $region18: #{forward.1} parent=11 // pred_check_branch
          %215 = sbr.rel (%p213) target = $region20
        $region19: #{forward.1} parent=11 // pred_region
          _
        $region20: #{forward.1} parent=11 // pred_fallthru
          _
        // Predicated region
        $region21: #{forward.1} parent=11 // pred_check
          %p216 = pneg %p106
        $region22: #{forward.1} parent=11 // pred_check_branch
          %218 = sbr.rel (%p216) target = $region24
        $region23: #{forward.1} parent=11 // pred_region
          %s220 = ssub.s32 18432, 18432
          %221 = vsyncadd [#allocation3], %s220
          %s222 = sshll.u32 [#allocation2], 4
          %s223 = int_to_ptr.vmem [resolvable:$true] %s222
          %228 = dma.hbm_to_vmem [thread:$0]  %s3, 18432, %s223, [#allocation3], 256, 256, 16
        $region24: #{forward.1} parent=11 // pred_fallthru
          _
        // Predicated region
        $region25: #{forward.1} parent=11 // pred_check
          %p229 = pneg %p127
        $region26: #{forward.1} parent=11 // pred_check_branch
          %231 = sbr.rel (%p229) target = $region28
        $region27: #{forward.1} parent=11 // pred_region
          _
        $region28: #{forward.1} parent=11 // pred_fallthru
          _
        // Predicated region
        $region29: #{forward.1} parent=11 // pred_check
          %p232 = pneg %p148
        $region30: #{forward.1} parent=11 // pred_check_branch
          %234 = sbr.rel (%p232) target = $region32
        $region31: #{forward.1} parent=11 // pred_region
          _
        $region32: #{forward.1} parent=11 // pred_fallthru
          _
        // Predicated region
        $region33: #{forward.1} parent=11 // pred_check
          %p235 = pneg %p169
        $region34: #{forward.1} parent=11 // pred_check_branch
          %237 = sbr.rel (%p235) target = $region36
        $region35: #{forward.1} parent=11 // pred_region
          _
        $region36: #{forward.1} parent=11 // pred_fallthru
          _
      $region12: #{forward.1} parent=5 // pred_fallthru
        _
      %p238 = scmp.lt.s32.totalorder %s17, 2
      // Predicated region
      $region37: #{forward.1} parent=5 // pred_check
        %p239 = pneg %p238
      $region38: #{forward.1} parent=5 // pred_check_branch
        %241 = sbr.rel (%p239) target = $region40
      $region39: #{forward.1} parent=5 // pred_region
        // Predicated region
        $region41: #{forward.1} parent=39 // pred_check
          %p242 = pneg %p37
        $region42: #{forward.1} parent=39 // pred_check_branch
          %244 = sbr.rel (%p242) target = $region44
        $region43: #{forward.1} parent=39 // pred_region
          %p245 = scmp.lt.s32.totalorder %s17, 1
          %s246 = scalar_select %p245, %s17, 1
          %s247 = smul.addr %s246, 3
          %s248 = smul.addr %s247, 2
          %s249 = scalar_lea.vmem %s0, %s248
        $region44: #{forward.1} parent=39 // pred_fallthru
          _
      $region40: #{forward.1} parent=5 // pred_fallthru
        _
      %p250 = scmp.le.s32.totalorder 1, %s17
      %p251 = scmp.lt.s32.totalorder %s17, 3
      %p252 = pnand %p250, %p251
      %p253 = pneg %p252
      // Predicated region
      $region45: #{forward.1} parent=5 // pred_check
        _
      $region46: #{forward.1} parent=5 // pred_check_branch
        %255 = sbr.rel (%p252) target = $region48
      $region47: #{forward.1} parent=5 // pred_region
        %s256 = ssub.s32 %s17, 1
        // Predicated region
        $region49: #{forward.1} parent=47 // pred_check
          %p257 = pneg %p106
        $region50: #{forward.1} parent=47 // pred_check_branch
          %259 = sbr.rel (%p257) target = $region52
        $region51: #{forward.1} parent=47 // pred_region
          %260 = dma.done [#allocation3], 18432
        $region52: #{forward.1} parent=47 // pred_fallthru
          _
        %p261 = scmp.lt.s32.totalorder %s22, 1
        %s262 = scalar_select %p261, %s22, 1
        %s263 = smul.addr %s262, 3
        %s264 = smul.addr %s263, 2
        %s265 = scalar_lea.vmem %s0, %s264
        %p266 = pneg %p43
        %p267 = pneg %p40
        %p268 = pneg %p64
        %p269 = pneg %p61
        %p270 = pneg %p85
        %p271 = pneg %p82
        %p272 = pneg %p106
        %p273 = pneg %p103
        %p274 = pneg %p127
        %p275 = pneg %p124
        %p276 = pneg %p148
        %p277 = pneg %p145
        %p278 = pneg %p169
        %p279 = pneg %p166
        %p280 = pneg %p195
        %p281 = pneg %p192
        %s282 = sand.u32 %s182, 1
        %s283 = scalar_lea.sflag [#allocation4], %s282
        %s284 = sand.u32 %s182, 1
        %s285 = scalar_lea.vmem [#allocation5], %s284
        %p286 = scmp.lt.s32.totalorder %s22, 1
        %s287 = scalar_select %p286, %s22, 1
        %s288 = smul.addr %s287, 3
        %s289 = smul.addr %s288, 2
        %s290 = scalar_lea.vmem %s0, %s289
        %v292 = vld [vmem:[%s290] sm:$0x3f]
        %v293 = vld [vmem:[%s1] sm:$0x1]
        %s294 = scalar_lea.vmem %s1, 1
        %v295 = vld [vmem:[%s294] sm:$0x1]
        %v297 = vcombine.high %v292, %v292
        %v299 = vunpack.c.l.s4 1983009808
        %v300 = vunpack.c.0.s8 %v299
        %v301 = vlaneseq
        %v302 = vshrl.u32 %v301, 7
        %v303 = vsub.s32 %v300, %v302
        %v304 = vrot.slane %v292, %v303
        %v306 = vunpack.c.l.s4 1983009808
        %v307 = vunpack.c.0.s8 %v306
        %v308 = vlaneseq
        %v309 = vshrl.u32 %v308, 7
        %v310 = vsub.s32 %v307, %v309
        %v311 = vrot.slane %v297, %v310
        %v312 = vcombine.high %v304, %v304
        %313 = vrot.lane.b32.xlu0 %v304, 127
        %v314 = vpop.permute.xlu0 %313
        %315 = vrot.lane.b32.xlu0 %v312, 127
        %v316 = vpop.permute.xlu0 %315
        %317 = vrot.lane.b32.xlu0 %v311, 127
        %v318 = vpop.permute.xlu0 %317
        %vm319 = vcmask 1039360
        %v320 = vsel %vm319, %v314, %v316
        %v321 = vsel %vm319, %v316, %v318
        %vm322 = vcmask 31744
        %v324 = vsel %vm322, %v295, 0
        %vm326 = vcmask 1041408
        %v328 = vsel %vm326, %v320, 0
        %v331 = vsel %vm326, %v321, 0
        %v334 = vsel %vm326, %v318, 0
        %336 = vmatprep.subr.bf16.mxu0 %v331
        %337 = vmatpush1.bf16.msra.mxu0 %v328
        %338 = vmatprep.subr.bf16.mxu0 0
        %339 = vmatpush1.bf16.msra.mxu0 0
        %340 = vmatprep.subr.bf16.mxu0 0
        %341 = vmatpush1.bf16.msra.mxu0 0
        %342 = vmatprep.subr.bf16.mxu0 0
        %343 = vmatpush1.bf16.msra.mxu0 0
        %344 = vmatprep.subr.bf16.mxu0 0
        %345 = vmatpush1.bf16.msra.mxu0 0
        %346 = vmatprep.subr.bf16.mxu0 0
        %347 = vmatpush1.bf16.msra.mxu0 0
        %348 = vmatprep.subr.bf16.mxu0 0
        %349 = vmatpush1.bf16.msra.mxu0 0
        %350 = vmatprep.subr.bf16.mxu0 0
        %351 = vmatpush1.bf16.msra.mxu0 0
        %352 = vmatprep.subr.bf16.mxu0 0
        %353 = vmatpush1.bf16.msra.mxu0 0
        %354 = vmatprep.subr.bf16.mxu0 0
        %355 = vmatpush1.bf16.msra.mxu0 0
        %356 = vmatprep.subr.bf16.mxu0 0
        %357 = vmatpush1.bf16.msra.mxu0 0
        %358 = vmatprep.subr.bf16.mxu0 0
        %359 = vmatpush1.bf16.msra.mxu0 0
        %360 = vmatprep.subr.bf16.mxu0 0
        %361 = vmatpush1.bf16.msra.mxu0 0
        %362 = vmatprep.subr.bf16.mxu0 0
        %363 = vmatpush1.bf16.msra.mxu0 0
        %364 = vmatprep.subr.bf16.mxu0 0
        %365 = vmatpush1.bf16.msra.mxu0 0
        %366 = vmatprep.subr.bf16.mxu0 0
        %367 = vmatpush1.bf16.msra.mxu0 0
        %368 = vmatprep.mubr.bf16.mxu0 0
        %369 = vmatmul.mubr.bf16.gmra.mrb[0].mxu0 %v324
        %v370 = vpop.f32.mrb[0].mxu0
        %v371 = vadd.f32 0.0, %v370
        %v372 = vpop.f32.mrb[0].mxu0
        %v373 = vadd.f32 0.0, %v372
        %v374 = vpop.f32.mrb[0].mxu0
        %v375 = vpop.f32.mrb[0].mxu0
        %376 = vdwg.mxu0
        %377 = vmatprep.subr.bf16.mxu0 0
        %378 = vmatpush1.bf16.msra.mxu0 %v334
        %379 = vmatprep.subr.bf16.mxu0 0
        %380 = vmatpush1.bf16.msra.mxu0 0
        %381 = vmatprep.subr.bf16.mxu0 0
        %382 = vmatpush1.bf16.msra.mxu0 0
        %383 = vmatprep.subr.bf16.mxu0 0
        %384 = vmatpush1.bf16.msra.mxu0 0
        %385 = vmatprep.subr.bf16.mxu0 0
        %386 = vmatpush1.bf16.msra.mxu0 0
        %387 = vmatprep.subr.bf16.mxu0 0
        %388 = vmatpush1.bf16.msra.mxu0 0
        %389 = vmatprep.subr.bf16.mxu0 0
        %390 = vmatpush1.bf16.msra.mxu0 0
        %391 = vmatprep.subr.bf16.mxu0 0
        %392 = vmatpush1.bf16.msra.mxu0 0
        %393 = vmatprep.subr.bf16.mxu0 0
        %394 = vmatpush1.bf16.msra.mxu0 0
        %395 = vmatprep.subr.bf16.mxu0 0
        %396 = vmatpush1.bf16.msra.mxu0 0
        %397 = vmatprep.subr.bf16.mxu0 0
        %398 = vmatpush1.bf16.msra.mxu0 0
        %399 = vmatprep.subr.bf16.mxu0 0
        %400 = vmatpush1.bf16.msra.mxu0 0
        %401 = vmatprep.subr.bf16.mxu0 0
        %402 = vmatpush1.bf16.msra.mxu0 0
        %403 = vmatprep.subr.bf16.mxu0 0
        %404 = vmatpush1.bf16.msra.mxu0 0
        %405 = vmatprep.subr.bf16.mxu0 0
        %406 = vmatpush1.bf16.msra.mxu0 0
        %407 = vmatprep.subr.bf16.mxu0 0
        %408 = vmatpush1.bf16.msra.mxu0 0
        %409 = vmatprep.mubr.bf16.mxu0 0
        %410 = vmatmul.mubr.bf16.gmra.mrb[0].mxu0 %v324
        %v411 = vpop.f32.mrb[0].mxu0
        %v412 = vadd.f32 0.0, %v411
        %v413 = vpop.f32.mrb[0].mxu0
        %v414 = vpop.f32.mrb[0].mxu0
        %v415 = vpop.f32.mrb[0].mxu0
        %416 = vdwg.mxu0
        %v418 = vsel %vm322, %v293, 0
        %v421 = vsel %vm326, %v304, 0
        %v424 = vsel %vm326, %v312, 0
        %v427 = vsel %vm326, %v311, 0
        %429 = vmatprep.subr.bf16.mxu0 %v424
        %430 = vmatpush1.bf16.msra.mxu0 %v421
        %431 = vmatprep.subr.bf16.mxu0 0
        %432 = vmatpush1.bf16.msra.mxu0 0
        %433 = vmatprep.subr.bf16.mxu0 0
        %434 = vmatpush1.bf16.msra.mxu0 0
        %435 = vmatprep.subr.bf16.mxu0 0
        %436 = vmatpush1.bf16.msra.mxu0 0
        %437 = vmatprep.subr.bf16.mxu0 0
        %438 = vmatpush1.bf16.msra.mxu0 0
        %439 = vmatprep.subr.bf16.mxu0 0
        %440 = vmatpush1.bf16.msra.mxu0 0
        %441 = vmatprep.subr.bf16.mxu0 0
        %442 = vmatpush1.bf16.msra.mxu0 0
        %443 = vmatprep.subr.bf16.mxu0 0
        %444 = vmatpush1.bf16.msra.mxu0 0
        %445 = vmatprep.subr.bf16.mxu0 0
        %446 = vmatpush1.bf16.msra.mxu0 0
        %447 = vmatprep.subr.bf16.mxu0 0
        %448 = vmatpush1.bf16.msra.mxu0 0
        %449 = vmatprep.subr.bf16.mxu0 0
        %450 = vmatpush1.bf16.msra.mxu0 0
        %451 = vmatprep.subr.bf16.mxu0 0
        %452 = vmatpush1.bf16.msra.mxu0 0
        %453 = vmatprep.subr.bf16.mxu0 0
        %454 = vmatpush1.bf16.msra.mxu0 0
        %455 = vmatprep.subr.bf16.mxu0 0
        %456 = vmatpush1.bf16.msra.mxu0 0
        %457 = vmatprep.subr.bf16.mxu0 0
        %458 = vmatpush1.bf16.msra.mxu0 0
        %459 = vmatprep.subr.bf16.mxu0 0
        %460 = vmatpush1.bf16.msra.mxu0 0
        %461 = vmatprep.mubr.bf16.mxu0 0
        %462 = vmatmul.mubr.bf16.gmra.mrb[0].mxu0 %v418
        %v463 = vpop.f32.mrb[0].mxu0
        %v464 = vadd.f32 %v371, %v463
        %v465 = vpop.f32.mrb[0].mxu0
        %v466 = vadd.f32 %v373, %v465
        %v467 = vpop.f32.mrb[0].mxu0
        %v468 = vpop.f32.mrb[0].mxu0
        %469 = vdwg.mxu0
        %470 = vmatprep.subr.bf16.mxu0 0
        %471 = vmatpush1.bf16.msra.mxu0 %v427
        %472 = vmatprep.subr.bf16.mxu0 0
        %473 = vmatpush1.bf16.msra.mxu0 0
        %474 = vmatprep.subr.bf16.mxu0 0
        %475 = vmatpush1.bf16.msra.mxu0 0
        %476 = vmatprep.subr.bf16.mxu0 0
        %477 = vmatpush1.bf16.msra.mxu0 0
        %478 = vmatprep.subr.bf16.mxu0 0
        %479 = vmatpush1.bf16.msra.mxu0 0
        %480 = vmatprep.subr.bf16.mxu0 0
        %481 = vmatpush1.bf16.msra.mxu0 0
        %482 = vmatprep.subr.bf16.mxu0 0
        %483 = vmatpush1.bf16.msra.mxu0 0
        %484 = vmatprep.subr.bf16.mxu0 0
        %485 = vmatpush1.bf16.msra.mxu0 0
        %486 = vmatprep.subr.bf16.mxu0 0
        %487 = vmatpush1.bf16.msra.mxu0 0
        %488 = vmatprep.subr.bf16.mxu0 0
        %489 = vmatpush1.bf16.msra.mxu0 0
        %490 = vmatprep.subr.bf16.mxu0 0
        %491 = vmatpush1.bf16.msra.mxu0 0
        %492 = vmatprep.subr.bf16.mxu0 0
        %493 = vmatpush1.bf16.msra.mxu0 0
        %494 = vmatprep.subr.bf16.mxu0 0
        %495 = vmatpush1.bf16.msra.mxu0 0
        %496 = vmatprep.subr.bf16.mxu0 0
        %497 = vmatpush1.bf16.msra.mxu0 0
        %498 = vmatprep.subr.bf16.mxu0 0
        %499 = vmatpush1.bf16.msra.mxu0 0
        %500 = vmatprep.subr.bf16.mxu0 0
        %501 = vmatpush1.bf16.msra.mxu0 0
        %502 = vmatprep.mubr.bf16.mxu0 0
        %503 = vmatmul.mubr.bf16.gmra.mrb[0].mxu0 %v418
        %v504 = vpop.f32.mrb[0].mxu0
        %v505 = vadd.f32 %v412, %v504
        %v506 = vpop.f32.mrb[0].mxu0
        %v507 = vpop.f32.mrb[0].mxu0
        %v508 = vpop.f32.mrb[0].mxu0
        %509 = vdwg.mxu0
        %v510 = vld [vmem:[%s290] sm:$0x3f]
        %s511 = scalar_lea.vmem %s1, 2
        %v512 = vld [vmem:[%s511] sm:$0x1]
        %v514 = vcombine.high %v510, %v510
        %v516 = vunpack.c.l.s4 1983009808
        %v517 = vunpack.c.0.s8 %v516
        %v518 = vlaneseq
        %v519 = vshrl.u32 %v518, 7
        %v520 = vsub.s32 %v517, %v519
        %v521 = vrot.slane %v510, %v520
        %v523 = vunpack.c.l.s4 1983009808
        %v524 = vunpack.c.0.s8 %v523
        %v525 = vlaneseq
        %v526 = vshrl.u32 %v525, 7
        %v527 = vsub.s32 %v524, %v526
        %v528 = vrot.slane %v514, %v527
        %v529 = vcombine.high %v521, %v521
        %530 = vrot.lane.b32.xlu0 %v521, 126
        %v531 = vpop.permute.xlu0 %530
        %532 = vrot.lane.b32.xlu0 %v529, 126
        %v533 = vpop.permute.xlu0 %532
        %534 = vrot.lane.b32.xlu0 %v528, 126
        %v535 = vpop.permute.xlu0 %534
        %vm536 = vcmask 1031168
        %v537 = vsel %vm536, %v531, %v533
        %v538 = vsel %vm536, %v533, %v535
        %v540 = vsel %vm322, %v512, 0
        %v543 = vsel %vm326, %v537, 0
        %v546 = vsel %vm326, %v538, 0
        %v549 = vsel %vm326, %v535, 0
        %551 = vmatprep.subr.bf16.mxu0 %v546
        %552 = vmatpush1.bf16.msra.mxu0 %v543
        %553 = vmatprep.subr.bf16.mxu0 0
        %554 = vmatpush1.bf16.msra.mxu0 0
        %555 = vmatprep.subr.bf16.mxu0 0
        %556 = vmatpush1.bf16.msra.mxu0 0
        %557 = vmatprep.subr.bf16.mxu0 0
        %558 = vmatpush1.bf16.msra.mxu0 0
        %559 = vmatprep.subr.bf16.mxu0 0
        %560 = vmatpush1.bf16.msra.mxu0 0
        %561 = vmatprep.subr.bf16.mxu0 0
        %562 = vmatpush1.bf16.msra.mxu0 0
        %563 = vmatprep.subr.bf16.mxu0 0
        %564 = vmatpush1.bf16.msra.mxu0 0
        %565 = vmatprep.subr.bf16.mxu0 0
        %566 = vmatpush1.bf16.msra.mxu0 0
        %567 = vmatprep.subr.bf16.mxu0 0
        %568 = vmatpush1.bf16.msra.mxu0 0
        %569 = vmatprep.subr.bf16.mxu0 0
        %570 = vmatpush1.bf16.msra.mxu0 0
        %571 = vmatprep.subr.bf16.mxu0 0
        %572 = vmatpush1.bf16.msra.mxu0 0
        %573 = vmatprep.subr.bf16.mxu0 0
        %574 = vmatpush1.bf16.msra.mxu0 0
        %575 = vmatprep.subr.bf16.mxu0 0
        %576 = vmatpush1.bf16.msra.mxu0 0
        %577 = vmatprep.subr.bf16.mxu0 0
        %578 = vmatpush1.bf16.msra.mxu0 0
        %579 = vmatprep.subr.bf16.mxu0 0
        %580 = vmatpush1.bf16.msra.mxu0 0
        %581 = vmatprep.subr.bf16.mxu0 0
        %582 = vmatpush1.bf16.msra.mxu0 0
        %583 = vmatprep.mubr.bf16.mxu0 0
        %584 = vmatmul.mubr.bf16.gmra.mrb[0].mxu0 %v540
        %v585 = vpop.f32.mrb[0].mxu0
        %v586 = vadd.f32 0.0, %v585
        %v587 = vpop.f32.mrb[0].mxu0
        %v588 = vadd.f32 0.0, %v587
        %v589 = vpop.f32.mrb[0].mxu0
        %v590 = vpop.f32.mrb[0].mxu0
        %591 = vdwg.mxu0
        %592 = vmatprep.subr.bf16.mxu0 0
        %593 = vmatpush1.bf16.msra.mxu0 %v549
        %594 = vmatprep.subr.bf16.mxu0 0
        %595 = vmatpush1.bf16.msra.mxu0 0
        %596 = vmatprep.subr.bf16.mxu0 0
        %597 = vmatpush1.bf16.msra.mxu0 0
        %598 = vmatprep.subr.bf16.mxu0 0
        %599 = vmatpush1.bf16.msra.mxu0 0
        %600 = vmatprep.subr.bf16.mxu0 0
        %601 = vmatpush1.bf16.msra.mxu0 0
        %602 = vmatprep.subr.bf16.mxu0 0
        %603 = vmatpush1.bf16.msra.mxu0 0
        %604 = vmatprep.subr.bf16.mxu0 0
        %605 = vmatpush1.bf16.msra.mxu0 0
        %606 = vmatprep.subr.bf16.mxu0 0
        %607 = vmatpush1.bf16.msra.mxu0 0
        %608 = vmatprep.subr.bf16.mxu0 0
        %609 = vmatpush1.bf16.msra.mxu0 0
        %610 = vmatprep.subr.bf16.mxu0 0
        %611 = vmatpush1.bf16.msra.mxu0 0
        %612 = vmatprep.subr.bf16.mxu0 0
        %613 = vmatpush1.bf16.msra.mxu0 0
        %614 = vmatprep.subr.bf16.mxu0 0
        %615 = vmatpush1.bf16.msra.mxu0 0
        %616 = vmatprep.subr.bf16.mxu0 0
        %617 = vmatpush1.bf16.msra.mxu0 0
        %618 = vmatprep.subr.bf16.mxu0 0
        %619 = vmatpush1.bf16.msra.mxu0 0
        %620 = vmatprep.subr.bf16.mxu0 0
        %621 = vmatpush1.bf16.msra.mxu0 0
        %622 = vmatprep.subr.bf16.mxu0 0
        %623 = vmatpush1.bf16.msra.mxu0 0
        %624 = vmatprep.mubr.bf16.mxu0 0
        %625 = vmatmul.mubr.bf16.gmra.mrb[0].mxu0 %v540
        %v626 = vpop.f32.mrb[0].mxu0
        %v627 = vadd.f32 0.0, %v626
        %v628 = vpop.f32.mrb[0].mxu0
        %v629 = vpop.f32.mrb[0].mxu0
        %v630 = vpop.f32.mrb[0].mxu0
        %631 = vdwg.mxu0
        %v632 = vadd.f32 %v464, %v586
        %v633 = vadd.f32 %v466, %v588
        %v634 = vadd.f32 %v505, %v627
        %v635 = vld [vmem:[%s290] sm:$0x3f]
        %s636 = scalar_lea.vmem %s1, 3
        %v637 = vld [vmem:[%s636] sm:$0x1]
        %v639 = vcombine.high %v635, %v635
        %v641 = vunpack.c.l.s4 1983009808
        %v642 = vunpack.c.0.s8 %v641
        %v643 = vlaneseq
        %v644 = vshrl.u32 %v643, 7
        %v645 = vsub.s32 %v642, %v644
        %v646 = vrot.slane %v635, %v645
        %v648 = vunpack.c.l.s4 1983009808
        %v649 = vunpack.c.0.s8 %v648
        %v650 = vlaneseq
        %v651 = vshrl.u32 %v650, 7
        %v652 = vsub.s32 %v649, %v651
        %v653 = vrot.slane %v639, %v652
        %v654 = vcombine.high %v646, %v646
        %655 = vrot.lane.b32.xlu0 %v646, 110
        %v656 = vpop.permute.xlu0 %655
        %657 = vrot.lane.b32.xlu0 %v654, 110
        %v658 = vpop.permute.xlu0 %657
        %659 = vrot.lane.b32.xlu0 %v653, 110
        %v660 = vpop.permute.xlu0 %659
        %vm661 = vcmask 900096
        %v662 = vsel %vm661, %v656, %v658
        %v663 = vsel %vm661, %v658, %v660
        %v665 = vsel %vm322, %v637, 0
        %v668 = vsel %vm326, %v662, 0
        %v671 = vsel %vm326, %v663, 0
        %v674 = vsel %vm326, %v660, 0
        %676 = vmatprep.subr.bf16.mxu0 %v671
        %677 = vmatpush1.bf16.msra.mxu0 %v668
        %678 = vmatprep.subr.bf16.mxu0 0
        %679 = vmatpush1.bf16.msra.mxu0 0
        %680 = vmatprep.subr.bf16.mxu0 0
        %681 = vmatpush1.bf16.msra.mxu0 0
        %682 = vmatprep.subr.bf16.mxu0 0
        %683 = vmatpush1.bf16.msra.mxu0 0
        %684 = vmatprep.subr.bf16.mxu0 0
        %685 = vmatpush1.bf16.msra.mxu0 0
        %686 = vmatprep.subr.bf16.mxu0 0
        %687 = vmatpush1.bf16.msra.mxu0 0
        %688 = vmatprep.subr.bf16.mxu0 0
        %689 = vmatpush1.bf16.msra.mxu0 0
        %690 = vmatprep.subr.bf16.mxu0 0
        %691 = vmatpush1.bf16.msra.mxu0 0
        %692 = vmatprep.subr.bf16.mxu0 0
        %693 = vmatpush1.bf16.msra.mxu0 0
        %694 = vmatprep.subr.bf16.mxu0 0
        %695 = vmatpush1.bf16.msra.mxu0 0
        %696 = vmatprep.subr.bf16.mxu0 0
        %697 = vmatpush1.bf16.msra.mxu0 0
        %698 = vmatprep.subr.bf16.mxu0 0
        %699 = vmatpush1.bf16.msra.mxu0 0
        %700 = vmatprep.subr.bf16.mxu0 0
        %701 = vmatpush1.bf16.msra.mxu0 0
        %702 = vmatprep.subr.bf16.mxu0 0
        %703 = vmatpush1.bf16.msra.mxu0 0
        %704 = vmatprep.subr.bf16.mxu0 0
        %705 = vmatpush1.bf16.msra.mxu0 0
        %706 = vmatprep.subr.bf16.mxu0 0
        %707 = vmatpush1.bf16.msra.mxu0 0
        %708 = vmatprep.mubr.bf16.mxu0 0
        %709 = vmatmul.mubr.bf16.gmra.mrb[0].mxu0 %v665
        %v710 = vpop.f32.mrb[0].mxu0
        %v711 = vadd.f32 0.0, %v710
        %v712 = vpop.f32.mrb[0].mxu0
        %v713 = vadd.f32 0.0, %v712
        %v714 = vpop.f32.mrb[0].mxu0
        %v715 = vpop.f32.mrb[0].mxu0
        %716 = vdwg.mxu0
        %717 = vmatprep.subr.bf16.mxu0 0
        %718 = vmatpush1.bf16.msra.mxu0 %v674
        %719 = vmatprep.subr.bf16.mxu0 0
        %720 = vmatpush1.bf16.msra.mxu0 0
        %721 = vmatprep.subr.bf16.mxu0 0
        %722 = vmatpush1.bf16.msra.mxu0 0
        %723 = vmatprep.subr.bf16.mxu0 0
        %724 = vmatpush1.bf16.msra.mxu0 0
        %725 = vmatprep.subr.bf16.mxu0 0
        %726 = vmatpush1.bf16.msra.mxu0 0
        %727 = vmatprep.subr.bf16.mxu0 0
        %728 = vmatpush1.bf16.msra.mxu0 0
        %729 = vmatprep.subr.bf16.mxu0 0
        %730 = vmatpush1.bf16.msra.mxu0 0
        %731 = vmatprep.subr.bf16.mxu0 0
        %732 = vmatpush1.bf16.msra.mxu0 0
        %733 = vmatprep.subr.bf16.mxu0 0
        %734 = vmatpush1.bf16.msra.mxu0 0
        %735 = vmatprep.subr.bf16.mxu0 0
        %736 = vmatpush1.bf16.msra.mxu0 0
        %737 = vmatprep.subr.bf16.mxu0 0
        %738 = vmatpush1.bf16.msra.mxu0 0
        %739 = vmatprep.subr.bf16.mxu0 0
        %740 = vmatpush1.bf16.msra.mxu0 0
        %741 = vmatprep.subr.bf16.mxu0 0
        %742 = vmatpush1.bf16.msra.mxu0 0
        %743 = vmatprep.subr.bf16.mxu0 0
        %744 = vmatpush1.bf16.msra.mxu0 0
        %745 = vmatprep.subr.bf16.mxu0 0
        %746 = vmatpush1.bf16.msra.mxu0 0
        %747 = vmatprep.subr.bf16.mxu0 0
        %748 = vmatpush1.bf16.msra.mxu0 0
        %749 = vmatprep.mubr.bf16.mxu0 0
        %750 = vmatmul.mubr.bf16.gmra.mrb[0].mxu0 %v665
        %v751 = vpop.f32.mrb[0].mxu0
        %v752 = vadd.f32 0.0, %v751
        %v753 = vpop.f32.mrb[0].mxu0
        %v754 = vpop.f32.mrb[0].mxu0
        %v755 = vpop.f32.mrb[0].mxu0
        %756 = vdwg.mxu0
        %v757 = vadd.f32 %v632, %v711
        %v758 = vadd.f32 %v633, %v713
        %v759 = vadd.f32 %v634, %v752
        %v760 = vld [vmem:[%s290] sm:$0x3f]
        %s761 = scalar_lea.vmem %s1, 4
        %v762 = vld [vmem:[%s761] sm:$0x1]
        %v764 = vcombine.high %v760, %v760
        %v766 = vunpack.c.l.s4 1983009808
        %v767 = vunpack.c.0.s8 %v766
        %v768 = vlaneseq
        %v769 = vshrl.u32 %v768, 7
        %v770 = vsub.s32 %v767, %v769
        %v771 = vrot.slane %v760, %v770
        %v773 = vunpack.c.l.s4 1983009808
        %v774 = vunpack.c.0.s8 %v773
        %v775 = vlaneseq
        %v776 = vshrl.u32 %v775, 7
        %v777 = vsub.s32 %v774, %v776
        %v778 = vrot.slane %v764, %v777
        %v779 = vcombine.high %v771, %v771
        %780 = vrot.lane.b32.xlu0 %v771, 109
        %v781 = vpop.permute.xlu0 %780
        %782 = vrot.lane.b32.xlu0 %v779, 109
        %v783 = vpop.permute.xlu0 %782
        %784 = vrot.lane.b32.xlu0 %v778, 109
        %v785 = vpop.permute.xlu0 %784
        %vm786 = vcmask 891904
        %v787 = vsel %vm786, %v781, %v783
        %v788 = vsel %vm786, %v783, %v785
        %v790 = vsel %vm322, %v762, 0
        %v793 = vsel %vm326, %v787, 0
        %v796 = vsel %vm326, %v788, 0
        %v799 = vsel %vm326, %v785, 0
        %801 = vmatprep.subr.bf16.mxu0 %v796
        %802 = vmatpush1.bf16.msra.mxu0 %v793
        %803 = vmatprep.subr.bf16.mxu0 0
        %804 = vmatpush1.bf16.msra.mxu0 0
        %805 = vmatprep.subr.bf16.mxu0 0
        %806 = vmatpush1.bf16.msra.mxu0 0
        %807 = vmatprep.subr.bf16.mxu0 0
        %808 = vmatpush1.bf16.msra.mxu0 0
        %809 = vmatprep.subr.bf16.mxu0 0
        %810 = vmatpush1.bf16.msra.mxu0 0
        %811 = vmatprep.subr.bf16.mxu0 0
        %812 = vmatpush1.bf16.msra.mxu0 0
        %813 = vmatprep.subr.bf16.mxu0 0
        %814 = vmatpush1.bf16.msra.mxu0 0
        %815 = vmatprep.subr.bf16.mxu0 0
        %816 = vmatpush1.bf16.msra.mxu0 0
        %817 = vmatprep.subr.bf16.mxu0 0
        %818 = vmatpush1.bf16.msra.mxu0 0
        %819 = vmatprep.subr.bf16.mxu0 0
        %820 = vmatpush1.bf16.msra.mxu0 0
        %821 = vmatprep.subr.bf16.mxu0 0
        %822 = vmatpush1.bf16.msra.mxu0 0
        %823 = vmatprep.subr.bf16.mxu0 0
        %824 = vmatpush1.bf16.msra.mxu0 0
        %825 = vmatprep.subr.bf16.mxu0 0
        %826 = vmatpush1.bf16.msra.mxu0 0
        %827 = vmatprep.subr.bf16.mxu0 0
        %828 = vmatpush1.bf16.msra.mxu0 0
        %829 = vmatprep.subr.bf16.mxu0 0
        %830 = vmatpush1.bf16.msra.mxu0 0
        %831 = vmatprep.subr.bf16.mxu0 0
        %832 = vmatpush1.bf16.msra.mxu0 0
        %833 = vmatprep.mubr.bf16.mxu0 0
        %834 = vmatmul.mubr.bf16.gmra.mrb[0].mxu0 %v790
        %v835 = vpop.f32.mrb[0].mxu0
        %v836 = vadd.f32 0.0, %v835
        %v837 = vpop.f32.mrb[0].mxu0
        %v838 = vadd.f32 0.0, %v837
        %v839 = vpop.f32.mrb[0].mxu0
        %v840 = vpop.f32.mrb[0].mxu0
        %841 = vdwg.mxu0
        %842 = vmatprep.subr.bf16.mxu0 0
        %843 = vmatpush1.bf16.msra.mxu0 %v799
        %844 = vmatprep.subr.bf16.mxu0 0
        %845 = vmatpush1.bf16.msra.mxu0 0
        %846 = vmatprep.subr.bf16.mxu0 0
        %847 = vmatpush1.bf16.msra.mxu0 0
        %848 = vmatprep.subr.bf16.mxu0 0
        %849 = vmatpush1.bf16.msra.mxu0 0
        %850 = vmatprep.subr.bf16.mxu0 0
        %851 = vmatpush1.bf16.msra.mxu0 0
        %852 = vmatprep.subr.bf16.mxu0 0
        %853 = vmatpush1.bf16.msra.mxu0 0
        %854 = vmatprep.subr.bf16.mxu0 0
        %855 = vmatpush1.bf16.msra.mxu0 0
        %856 = vmatprep.subr.bf16.mxu0 0
        %857 = vmatpush1.bf16.msra.mxu0 0
        %858 = vmatprep.subr.bf16.mxu0 0
        %859 = vmatpush1.bf16.msra.mxu0 0
        %860 = vmatprep.subr.bf16.mxu0 0
        %861 = vmatpush1.bf16.msra.mxu0 0
        %862 = vmatprep.subr.bf16.mxu0 0
        %863 = vmatpush1.bf16.msra.mxu0 0
        %864 = vmatprep.subr.bf16.mxu0 0
        %865 = vmatpush1.bf16.msra.mxu0 0
        %866 = vmatprep.subr.bf16.mxu0 0
        %867 = vmatpush1.bf16.msra.mxu0 0
        %868 = vmatprep.subr.bf16.mxu0 0
        %869 = vmatpush1.bf16.msra.mxu0 0
        %870 = vmatprep.subr.bf16.mxu0 0
        %871 = vmatpush1.bf16.msra.mxu0 0
        %872 = vmatprep.subr.bf16.mxu0 0
        %873 = vmatpush1.bf16.msra.mxu0 0
        %874 = vmatprep.mubr.bf16.mxu0 0
        %875 = vmatmul.mubr.bf16.gmra.mrb[0].mxu0 %v790
        %v876 = vpop.f32.mrb[0].mxu0
        %v877 = vadd.f32 0.0, %v876
        %v878 = vpop.f32.mrb[0].mxu0
        %v879 = vpop.f32.mrb[0].mxu0
        %v880 = vpop.f32.mrb[0].mxu0
        %881 = vdwg.mxu0
        %v882 = vadd.f32 %v757, %v836
        %v883 = vadd.f32 %v758, %v838
        %v884 = vadd.f32 %v759, %v877
        %v885 = vld [vmem:[%s290] sm:$0x3f]
        %s886 = scalar_lea.vmem %s1, 5
        %v887 = vld [vmem:[%s886] sm:$0x1]
        %v889 = vcombine.high %v885, %v885
        %v891 = vunpack.c.l.s4 1983009808
        %v892 = vunpack.c.0.s8 %v891
        %v893 = vlaneseq
        %v894 = vshrl.u32 %v893, 7
        %v895 = vsub.s32 %v892, %v894
        %v896 = vrot.slane %v885, %v895
        %v898 = vunpack.c.l.s4 1983009808
        %v899 = vunpack.c.0.s8 %v898
        %v900 = vlaneseq
        %v901 = vshrl.u32 %v900, 7
        %v902 = vsub.s32 %v899, %v901
        %v903 = vrot.slane %v889, %v902
        %v904 = vcombine.high %v896, %v896
        %905 = vrot.lane.b32.xlu0 %v896, 108
        %v906 = vpop.permute.xlu0 %905
        %907 = vrot.lane.b32.xlu0 %v904, 108
        %v908 = vpop.permute.xlu0 %907
        %909 = vrot.lane.b32.xlu0 %v903, 108
        %v910 = vpop.permute.xlu0 %909
        %vm911 = vcmask 883712
        %v912 = vsel %vm911, %v906, %v908
        %v913 = vsel %vm911, %v908, %v910
        %v915 = vsel %vm322, %v887, 0
        %v918 = vsel %vm326, %v912, 0
        %v921 = vsel %vm326, %v913, 0
        %v924 = vsel %vm326, %v910, 0
        %926 = vmatprep.subr.bf16.mxu0 %v921
        %927 = vmatpush1.bf16.msra.mxu0 %v918
        %928 = vmatprep.subr.bf16.mxu0 0
        %929 = vmatpush1.bf16.msra.mxu0 0
        %930 = vmatprep.subr.bf16.mxu0 0
        %931 = vmatpush1.bf16.msra.mxu0 0
        %932 = vmatprep.subr.bf16.mxu0 0
        %933 = vmatpush1.bf16.msra.mxu0 0
        %934 = vmatprep.subr.bf16.mxu0 0
        %935 = vmatpush1.bf16.msra.mxu0 0
        %936 = vmatprep.subr.bf16.mxu0 0
        %937 = vmatpush1.bf16.msra.mxu0 0
        %938 = vmatprep.subr.bf16.mxu0 0
        %939 = vmatpush1.bf16.msra.mxu0 0
        %940 = vmatprep.subr.bf16.mxu0 0
        %941 = vmatpush1.bf16.msra.mxu0 0
        %942 = vmatprep.subr.bf16.mxu0 0
        %943 = vmatpush1.bf16.msra.mxu0 0
        %944 = vmatprep.subr.bf16.mxu0 0
        %945 = vmatpush1.bf16.msra.mxu0 0
        %946 = vmatprep.subr.bf16.mxu0 0
        %947 = vmatpush1.bf16.msra.mxu0 0
        %948 = vmatprep.subr.bf16.mxu0 0
        %949 = vmatpush1.bf16.msra.mxu0 0
        %950 = vmatprep.subr.bf16.mxu0 0
        %951 = vmatpush1.bf16.msra.mxu0 0
        %952 = vmatprep.subr.bf16.mxu0 0
        %953 = vmatpush1.bf16.msra.mxu0 0
        %954 = vmatprep.subr.bf16.mxu0 0
        %955 = vmatpush1.bf16.msra.mxu0 0
        %956 = vmatprep.subr.bf16.mxu0 0
        %957 = vmatpush1.bf16.msra.mxu0 0
        %958 = vmatprep.mubr.bf16.mxu0 0
        %959 = vmatmul.mubr.bf16.gmra.mrb[0].mxu0 %v915
        %v960 = vpop.f32.mrb[0].mxu0
        %v961 = vadd.f32 0.0, %v960
        %v962 = vpop.f32.mrb[0].mxu0
        %v963 = vadd.f32 0.0, %v962
        %v964 = vpop.f32.mrb[0].mxu0
        %v965 = vpop.f32.mrb[0].mxu0
        %966 = vdwg.mxu0
        %967 = vmatprep.subr.bf16.mxu0 0
        %968 = vmatpush1.bf16.msra.mxu0 %v924
        %969 = vmatprep.subr.bf16.mxu0 0
        %970 = vmatpush1.bf16.msra.mxu0 0
        %971 = vmatprep.subr.bf16.mxu0 0
        %972 = vmatpush1.bf16.msra.mxu0 0
        %973 = vmatprep.subr.bf16.mxu0 0
        %974 = vmatpush1.bf16.msra.mxu0 0
        %975 = vmatprep.subr.bf16.mxu0 0
        %976 = vmatpush1.bf16.msra.mxu0 0
        %977 = vmatprep.subr.bf16.mxu0 0
        %978 = vmatpush1.bf16.msra.mxu0 0
        %979 = vmatprep.subr.bf16.mxu0 0
        %980 = vmatpush1.bf16.msra.mxu0 0
        %981 = vmatprep.subr.bf16.mxu0 0
        %982 = vmatpush1.bf16.msra.mxu0 0
        %983 = vmatprep.subr.bf16.mxu0 0
        %984 = vmatpush1.bf16.msra.mxu0 0
        %985 = vmatprep.subr.bf16.mxu0 0
        %986 = vmatpush1.bf16.msra.mxu0 0
        %987 = vmatprep.subr.bf16.mxu0 0
        %988 = vmatpush1.bf16.msra.mxu0 0
        %989 = vmatprep.subr.bf16.mxu0 0
        %990 = vmatpush1.bf16.msra.mxu0 0
        %991 = vmatprep.subr.bf16.mxu0 0
        %992 = vmatpush1.bf16.msra.mxu0 0
        %993 = vmatprep.subr.bf16.mxu0 0
        %994 = vmatpush1.bf16.msra.mxu0 0
        %995 = vmatprep.subr.bf16.mxu0 0
        %996 = vmatpush1.bf16.msra.mxu0 0
        %997 = vmatprep.subr.bf16.mxu0 0
        %998 = vmatpush1.bf16.msra.mxu0 0
        %999 = vmatprep.mubr.bf16.mxu0 0
        %1000 = vmatmul.mubr.bf16.gmra.mrb[0].mxu0 %v915
        %v1001 = vpop.f32.mrb[0].mxu0
        %v1002 = vadd.f32 0.0, %v1001
        %v1003 = vpop.f32.mrb[0].mxu0
        %v1004 = vpop.f32.mrb[0].mxu0
        %v1005 = vpop.f32.mrb[0].mxu0
        %1006 = vdwg.mxu0
        %v1007 = vadd.f32 %v882, %v961
        %v1008 = vadd.f32 %v883, %v963
        %v1009 = vadd.f32 %v884, %v1002
        %v1010 = vld [vmem:[%s290] sm:$0x3f]
        %s1011 = scalar_lea.vmem %s1, 6
        %v1012 = vld [vmem:[%s1011] sm:$0x1]
        %v1014 = vcombine.high %v1010, %v1010
        %v1016 = vunpack.c.l.s4 1983009808
        %v1017 = vunpack.c.0.s8 %v1016
        %v1018 = vlaneseq
        %v1019 = vshrl.u32 %v1018, 7
        %v1020 = vsub.s32 %v1017, %v1019
        %v1021 = vrot.slane %v1010, %v1020
        %v1023 = vunpack.c.l.s4 1983009808
        %v1024 = vunpack.c.0.s8 %v1023
        %v1025 = vlaneseq
        %v1026 = vshrl.u32 %v1025, 7
        %v1027 = vsub.s32 %v1024, %v1026
        %v1028 = vrot.slane %v1014, %v1027
        %v1029 = vcombine.high %v1021, %v1021
        %1030 = vrot.lane.b32.xlu0 %v1021, 92
        %v1031 = vpop.permute.xlu0 %1030
        %1032 = vrot.lane.b32.xlu0 %v1029, 92
        %v1033 = vpop.permute.xlu0 %1032
        %1034 = vrot.lane.b32.xlu0 %v1028, 92
        %v1035 = vpop.permute.xlu0 %1034
        %vm1036 = vcmask 752640
        %v1037 = vsel %vm1036, %v1031, %v1033
        %v1038 = vsel %vm1036, %v1033, %v1035
        %v1040 = vsel %vm322, %v1012, 0
        %v1043 = vsel %vm326, %v1037, 0
        %v1046 = vsel %vm326, %v1038, 0
        %v1049 = vsel %vm326, %v1035, 0
        %1051 = vmatprep.subr.bf16.mxu0 %v1046
        %1052 = vmatpush1.bf16.msra.mxu0 %v1043
        %1053 = vmatprep.subr.bf16.mxu0 0
        %1054 = vmatpush1.bf16.msra.mxu0 0
        %1055 = vmatprep.subr.bf16.mxu0 0
        %1056 = vmatpush1.bf16.msra.mxu0 0
        %1057 = vmatprep.subr.bf16.mxu0 0
        %1058 = vmatpush1.bf16.msra.mxu0 0
        %1059 = vmatprep.subr.bf16.mxu0 0
        %1060 = vmatpush1.bf16.msra.mxu0 0
        %1061 = vmatprep.subr.bf16.mxu0 0
        %1062 = vmatpush1.bf16.msra.mxu0 0
        %1063 = vmatprep.subr.bf16.mxu0 0
        %1064 = vmatpush1.bf16.msra.mxu0 0
        %1065 = vmatprep.subr.bf16.mxu0 0
        %1066 = vmatpush1.bf16.msra.mxu0 0
        %1067 = vmatprep.subr.bf16.mxu0 0
        %1068 = vmatpush1.bf16.msra.mxu0 0
        %1069 = vmatprep.subr.bf16.mxu0 0
        %1070 = vmatpush1.bf16.msra.mxu0 0
        %1071 = vmatprep.subr.bf16.mxu0 0
        %1072 = vmatpush1.bf16.msra.mxu0 0
        %1073 = vmatprep.subr.bf16.mxu0 0
        %1074 = vmatpush1.bf16.msra.mxu0 0
        %1075 = vmatprep.subr.bf16.mxu0 0
        %1076 = vmatpush1.bf16.msra.mxu0 0
        %1077 = vmatprep.subr.bf16.mxu0 0
        %1078 = vmatpush1.bf16.msra.mxu0 0
        %1079 = vmatprep.subr.bf16.mxu0 0
        %1080 = vmatpush1.bf16.msra.mxu0 0
        %1081 = vmatprep.subr.bf16.mxu0 0
        %1082 = vmatpush1.bf16.msra.mxu0 0
        %1083 = vmatprep.mubr.bf16.mxu0 0
        %1084 = vmatmul.mubr.bf16.gmra.mrb[0].mxu0 %v1040
        %v1085 = vpop.f32.mrb[0].mxu0
        %v1086 = vadd.f32 0.0, %v1085
        %v1087 = vpop.f32.mrb[0].mxu0
        %v1088 = vadd.f32 0.0, %v1087
        %v1089 = vpop.f32.mrb[0].mxu0
        %v1090 = vpop.f32.mrb[0].mxu0
        %1091 = vdwg.mxu0
        %1092 = vmatprep.subr.bf16.mxu0 0
        %1093 = vmatpush1.bf16.msra.mxu0 %v1049
        %1094 = vmatprep.subr.bf16.mxu0 0
        %1095 = vmatpush1.bf16.msra.mxu0 0
        %1096 = vmatprep.subr.bf16.mxu0 0
        %1097 = vmatpush1.bf16.msra.mxu0 0
        %1098 = vmatprep.subr.bf16.mxu0 0
        %1099 = vmatpush1.bf16.msra.mxu0 0
        %1100 = vmatprep.subr.bf16.mxu0 0
        %1101 = vmatpush1.bf16.msra.mxu0 0
        %1102 = vmatprep.subr.bf16.mxu0 0
        %1103 = vmatpush1.bf16.msra.mxu0 0
        %1104 = vmatprep.subr.bf16.mxu0 0
        %1105 = vmatpush1.bf16.msra.mxu0 0
        %1106 = vmatprep.subr.bf16.mxu0 0
        %1107 = vmatpush1.bf16.msra.mxu0 0
        %1108 = vmatprep.subr.bf16.mxu0 0
        %1109 = vmatpush1.bf16.msra.mxu0 0
        %1110 = vmatprep.subr.bf16.mxu0 0
        %1111 = vmatpush1.bf16.msra.mxu0 0
        %1112 = vmatprep.subr.bf16.mxu0 0
        %1113 = vmatpush1.bf16.msra.mxu0 0
        %1114 = vmatprep.subr.bf16.mxu0 0
        %1115 = vmatpush1.bf16.msra.mxu0 0
        %1116 = vmatprep.subr.bf16.mxu0 0
        %1117 = vmatpush1.bf16.msra.mxu0 0
        %1118 = vmatprep.subr.bf16.mxu0 0
        %1119 = vmatpush1.bf16.msra.mxu0 0
        %1120 = vmatprep.subr.bf16.mxu0 0
        %1121 = vmatpush1.bf16.msra.mxu0 0
        %1122 = vmatprep.subr.bf16.mxu0 0
        %1123 = vmatpush1.bf16.msra.mxu0 0
        %1124 = vmatprep.mubr.bf16.mxu0 0
        %1125 = vmatmul.mubr.bf16.gmra.mrb[0].mxu0 %v1040
        %v1126 = vpop.f32.mrb[0].mxu0
        %v1127 = vadd.f32 0.0, %v1126
        %v1128 = vpop.f32.mrb[0].mxu0
        %v1129 = vpop.f32.mrb[0].mxu0
        %v1130 = vpop.f32.mrb[0].mxu0
        %1131 = vdwg.mxu0
        %v1132 = vadd.f32 %v1007, %v1086
        %v1133 = vadd.f32 %v1008, %v1088
        %v1134 = vadd.f32 %v1009, %v1127
        %v1135 = vld [vmem:[%s290] sm:$0x3f]
        %s1136 = scalar_lea.vmem %s1, 7
        %v1137 = vld [vmem:[%s1136] sm:$0x1]
        %v1139 = vcombine.high %v1135, %v1135
        %v1141 = vunpack.c.l.s4 1983009808
        %v1142 = vunpack.c.0.s8 %v1141
        %v1143 = vlaneseq
        %v1144 = vshrl.u32 %v1143, 7
        %v1145 = vsub.s32 %v1142, %v1144
        %v1146 = vrot.slane %v1135, %v1145
        %v1148 = vunpack.c.l.s4 1983009808
        %v1149 = vunpack.c.0.s8 %v1148
        %v1150 = vlaneseq
        %v1151 = vshrl.u32 %v1150, 7
        %v1152 = vsub.s32 %v1149, %v1151
        %v1153 = vrot.slane %v1139, %v1152
        %v1154 = vcombine.high %v1146, %v1146
        %1155 = vrot.lane.b32.xlu0 %v1146, 91
        %v1156 = vpop.permute.xlu0 %1155
        %1157 = vrot.lane.b32.xlu0 %v1154, 91
        %v1158 = vpop.permute.xlu0 %1157
        %1159 = vrot.lane.b32.xlu0 %v1153, 91
        %v1160 = vpop.permute.xlu0 %1159
        %vm1161 = vcmask 744448
        %v1162 = vsel %vm1161, %v1156, %v1158
        %v1163 = vsel %vm1161, %v1158, %v1160
        %v1165 = vsel %vm322, %v1137, 0
        %v1168 = vsel %vm326, %v1162, 0
        %v1171 = vsel %vm326, %v1163, 0
        %v1174 = vsel %vm326, %v1160, 0
        %1176 = vmatprep.subr.bf16.mxu0 %v1171
        %1177 = vmatpush1.bf16.msra.mxu0 %v1168
        %1178 = vmatprep.subr.bf16.mxu0 0
        %1179 = vmatpush1.bf16.msra.mxu0 0
        %1180 = vmatprep.subr.bf16.mxu0 0
        %1181 = vmatpush1.bf16.msra.mxu0 0
        %1182 = vmatprep.subr.bf16.mxu0 0
        %1183 = vmatpush1.bf16.msra.mxu0 0
        %1184 = vmatprep.subr.bf16.mxu0 0
        %1185 = vmatpush1.bf16.msra.mxu0 0
        %1186 = vmatprep.subr.bf16.mxu0 0
        %1187 = vmatpush1.bf16.msra.mxu0 0
        %1188 = vmatprep.subr.bf16.mxu0 0
        %1189 = vmatpush1.bf16.msra.mxu0 0
        %1190 = vmatprep.subr.bf16.mxu0 0
        %1191 = vmatpush1.bf16.msra.mxu0 0
        %1192 = vmatprep.subr.bf16.mxu0 0
        %1193 = vmatpush1.bf16.msra.mxu0 0
        %1194 = vmatprep.subr.bf16.mxu0 0
        %1195 = vmatpush1.bf16.msra.mxu0 0
        %1196 = vmatprep.subr.bf16.mxu0 0
        %1197 = vmatpush1.bf16.msra.mxu0 0
        %1198 = vmatprep.subr.bf16.mxu0 0
        %1199 = vmatpush1.bf16.msra.mxu0 0
        %1200 = vmatprep.subr.bf16.mxu0 0
        %1201 = vmatpush1.bf16.msra.mxu0 0
        %1202 = vmatprep.subr.bf16.mxu0 0
        %1203 = vmatpush1.bf16.msra.mxu0 0
        %1204 = vmatprep.subr.bf16.mxu0 0
        %1205 = vmatpush1.bf16.msra.mxu0 0
        %1206 = vmatprep.subr.bf16.mxu0 0
        %1207 = vmatpush1.bf16.msra.mxu0 0
        %1208 = vmatprep.mubr.bf16.mxu0 0
        %1209 = vmatmul.mubr.bf16.gmra.mrb[0].mxu0 %v1165
        %v1210 = vpop.f32.mrb[0].mxu0
        %v1211 = vadd.f32 0.0, %v1210
        %v1212 = vpop.f32.mrb[0].mxu0
        %v1213 = vadd.f32 0.0, %v1212
        %v1214 = vpop.f32.mrb[0].mxu0
        %v1215 = vpop.f32.mrb[0].mxu0
        %1216 = vdwg.mxu0
        %1217 = vmatprep.subr.bf16.mxu0 0
        %1218 = vmatpush1.bf16.msra.mxu0 %v1174
        %1219 = vmatprep.subr.bf16.mxu0 0
        %1220 = vmatpush1.bf16.msra.mxu0 0
        %1221 = vmatprep.subr.bf16.mxu0 0
        %1222 = vmatpush1.bf16.msra.mxu0 0
        %1223 = vmatprep.subr.bf16.mxu0 0
        %1224 = vmatpush1.bf16.msra.mxu0 0
        %1225 = vmatprep.subr.bf16.mxu0 0
        %1226 = vmatpush1.bf16.msra.mxu0 0
        %1227 = vmatprep.subr.bf16.mxu0 0
        %1228 = vmatpush1.bf16.msra.mxu0 0
        %1229 = vmatprep.subr.bf16.mxu0 0
        %1230 = vmatpush1.bf16.msra.mxu0 0
        %1231 = vmatprep.subr.bf16.mxu0 0
        %1232 = vmatpush1.bf16.msra.mxu0 0
        %1233 = vmatprep.subr.bf16.mxu0 0
        %1234 = vmatpush1.bf16.msra.mxu0 0
        %1235 = vmatprep.subr.bf16.mxu0 0
        %1236 = vmatpush1.bf16.msra.mxu0 0
        %1237 = vmatprep.subr.bf16.mxu0 0
        %1238 = vmatpush1.bf16.msra.mxu0 0
        %1239 = vmatprep.subr.bf16.mxu0 0
        %1240 = vmatpush1.bf16.msra.mxu0 0
        %1241 = vmatprep.subr.bf16.mxu0 0
        %1242 = vmatpush1.bf16.msra.mxu0 0
        %1243 = vmatprep.subr.bf16.mxu0 0
        %1244 = vmatpush1.bf16.msra.mxu0 0
        %1245 = vmatprep.subr.bf16.mxu0 0
        %1246 = vmatpush1.bf16.msra.mxu0 0
        %1247 = vmatprep.subr.bf16.mxu0 0
        %1248 = vmatpush1.bf16.msra.mxu0 0
        %1249 = vmatprep.mubr.bf16.mxu0 0
        %1250 = vmatmul.mubr.bf16.gmra.mrb[0].mxu0 %v1165
        %v1251 = vpop.f32.mrb[0].mxu0
        %v1252 = vadd.f32 0.0, %v1251
        %v1253 = vpop.f32.mrb[0].mxu0
        %v1254 = vpop.f32.mrb[0].mxu0
        %v1255 = vpop.f32.mrb[0].mxu0
        %1256 = vdwg.mxu0
        %v1257 = vadd.f32 %v1132, %v1211
        %v1258 = vadd.f32 %v1133, %v1213
        %v1259 = vadd.f32 %v1134, %v1252
        %v1260 = vld [vmem:[%s290] sm:$0x3f]
        %s1261 = scalar_lea.vmem %s1, 8
        %v1262 = vld [vmem:[%s1261] sm:$0x1]
        %v1264 = vcombine.high %v1260, %v1260
        %v1266 = vunpack.c.l.s4 1983009808
        %v1267 = vunpack.c.0.s8 %v1266
        %v1268 = vlaneseq
        %v1269 = vshrl.u32 %v1268, 7
        %v1270 = vsub.s32 %v1267, %v1269
        %v1271 = vrot.slane %v1260, %v1270
        %v1273 = vunpack.c.l.s4 1983009808
        %v1274 = vunpack.c.0.s8 %v1273
        %v1275 = vlaneseq
        %v1276 = vshrl.u32 %v1275, 7
        %v1277 = vsub.s32 %v1274, %v1276
        %v1278 = vrot.slane %v1264, %v1277
        %v1279 = vcombine.high %v1271, %v1271
        %1280 = vrot.lane.b32.xlu0 %v1271, 90
        %v1281 = vpop.permute.xlu0 %1280
        %1282 = vrot.lane.b32.xlu0 %v1279, 90
        %v1283 = vpop.permute.xlu0 %1282
        %1284 = vrot.lane.b32.xlu0 %v1278, 90
        %v1285 = vpop.permute.xlu0 %1284
        %vm1286 = vcmask 736256
        %v1287 = vsel %vm1286, %v1281, %v1283
        %v1288 = vsel %vm1286, %v1283, %v1285
        %v1290 = vsel %vm322, %v1262, 0
        %v1293 = vsel %vm326, %v1287, 0
        %v1296 = vsel %vm326, %v1288, 0
        %v1299 = vsel %vm326, %v1285, 0
        %1301 = vmatprep.subr.bf16.mxu0 %v1296
        %1302 = vmatpush1.bf16.msra.mxu0 %v1293
        %1303 = vmatprep.subr.bf16.mxu0 0
        %1304 = vmatpush1.bf16.msra.mxu0 0
        %1305 = vmatprep.subr.bf16.mxu0 0
        %1306 = vmatpush1.bf16.msra.mxu0 0
        %1307 = vmatprep.subr.bf16.mxu0 0
        %1308 = vmatpush1.bf16.msra.mxu0 0
        %1309 = vmatprep.subr.bf16.mxu0 0
        %1310 = vmatpush1.bf16.msra.mxu0 0
        %1311 = vmatprep.subr.bf16.mxu0 0
        %1312 = vmatpush1.bf16.msra.mxu0 0
        %1313 = vmatprep.subr.bf16.mxu0 0
        %1314 = vmatpush1.bf16.msra.mxu0 0
        %1315 = vmatprep.subr.bf16.mxu0 0
        %1316 = vmatpush1.bf16.msra.mxu0 0
        %1317 = vmatprep.subr.bf16.mxu0 0
        %1318 = vmatpush1.bf16.msra.mxu0 0
        %1319 = vmatprep.subr.bf16.mxu0 0
        %1320 = vmatpush1.bf16.msra.mxu0 0
        %1321 = vmatprep.subr.bf16.mxu0 0
        %1322 = vmatpush1.bf16.msra.mxu0 0
        %1323 = vmatprep.subr.bf16.mxu0 0
        %1324 = vmatpush1.bf16.msra.mxu0 0
        %1325 = vmatprep.subr.bf16.mxu0 0
        %1326 = vmatpush1.bf16.msra.mxu0 0
        %1327 = vmatprep.subr.bf16.mxu0 0
        %1328 = vmatpush1.bf16.msra.mxu0 0
        %1329 = vmatprep.subr.bf16.mxu0 0
        %1330 = vmatpush1.bf16.msra.mxu0 0
        %1331 = vmatprep.subr.bf16.mxu0 0
        %1332 = vmatpush1.bf16.msra.mxu0 0
        %1333 = vmatprep.mubr.bf16.mxu0 0
        %1334 = vmatmul.mubr.bf16.gmra.mrb[0].mxu0 %v1290
        %v1335 = vpop.f32.mrb[0].mxu0
        %v1336 = vadd.f32 0.0, %v1335
        %v1337 = vpop.f32.mrb[0].mxu0
        %v1338 = vadd.f32 0.0, %v1337
        %v1339 = vpop.f32.mrb[0].mxu0
        %v1340 = vpop.f32.mrb[0].mxu0
        %1341 = vdwg.mxu0
        %1342 = vmatprep.subr.bf16.mxu0 0
        %1343 = vmatpush1.bf16.msra.mxu0 %v1299
        %1344 = vmatprep.subr.bf16.mxu0 0
        %1345 = vmatpush1.bf16.msra.mxu0 0
        %1346 = vmatprep.subr.bf16.mxu0 0
        %1347 = vmatpush1.bf16.msra.mxu0 0
        %1348 = vmatprep.subr.bf16.mxu0 0
        %1349 = vmatpush1.bf16.msra.mxu0 0
        %1350 = vmatprep.subr.bf16.mxu0 0
        %1351 = vmatpush1.bf16.msra.mxu0 0
        %1352 = vmatprep.subr.bf16.mxu0 0
        %1353 = vmatpush1.bf16.msra.mxu0 0
        %1354 = vmatprep.subr.bf16.mxu0 0
        %1355 = vmatpush1.bf16.msra.mxu0 0
        %1356 = vmatprep.subr.bf16.mxu0 0
        %1357 = vmatpush1.bf16.msra.mxu0 0
        %1358 = vmatprep.subr.bf16.mxu0 0
        %1359 = vmatpush1.bf16.msra.mxu0 0
        %1360 = vmatprep.subr.bf16.mxu0 0
        %1361 = vmatpush1.bf16.msra.mxu0 0
        %1362 = vmatprep.subr.bf16.mxu0 0
        %1363 = vmatpush1.bf16.msra.mxu0 0
        %1364 = vmatprep.subr.bf16.mxu0 0
        %1365 = vmatpush1.bf16.msra.mxu0 0
        %1366 = vmatprep.subr.bf16.mxu0 0
        %1367 = vmatpush1.bf16.msra.mxu0 0
        %1368 = vmatprep.subr.bf16.mxu0 0
        %1369 = vmatpush1.bf16.msra.mxu0 0
        %1370 = vmatprep.subr.bf16.mxu0 0
        %1371 = vmatpush1.bf16.msra.mxu0 0
        %1372 = vmatprep.subr.bf16.mxu0 0
        %1373 = vmatpush1.bf16.msra.mxu0 0
        %1374 = vmatprep.mubr.bf16.mxu0 0
        %1375 = vmatmul.mubr.bf16.gmra.mrb[0].mxu0 %v1290
        %v1376 = vpop.f32.mrb[0].mxu0
        %v1377 = vadd.f32 0.0, %v1376
        %v1378 = vpop.f32.mrb[0].mxu0
        %v1379 = vpop.f32.mrb[0].mxu0
        %v1380 = vpop.f32.mrb[0].mxu0
        %1381 = vdwg.mxu0
        %v1382 = vadd.f32 %v1257, %v1336
        %v1383 = vadd.f32 %v1258, %v1338
        %v1384 = vadd.f32 %v1259, %v1377
        %v1385 = vld [vmem:[%s2] sm:$0x3]
        %1387 = vset.pattern.permute.xlu0 0
        %1388 = vperm.xlu0 %1387, %v1385
        %v1389 = vpop.permute.xlu0 %1388
        %v1391 = vadd.f32 %v1382, %v1389
        %v1392 = vadd.f32 %v1383, %v1389
        %v1393 = vadd.f32 %v1384, %v1389
        %v1394 = vmax.f32 %v1391, 0.0
        %v1395 = vmax.f32 %v1392, 0.0
        %v1396 = vmax.f32 %v1393, 0.0
        %v1397 = vpack.c.bf16 %v1394, %v1394
        %v1398 = vpack.c.bf16 %v1395, %v1395
        %v1399 = vpack.c.bf16 %v1396, %v1396
        %v1400 = vld [vmem:[%s4] sm:$0xf]
        %v1401 = vld [vmem:[#allocation2] sm:$0xff]
        %v1402 = vld [vmem:[#allocation2 + $0x8] sm:$0xff]
        %v1403 = vld [vmem:[#allocation2 + $0x10] sm:$0xff]
        %v1404 = vld [vmem:[#allocation2 + $0x18] sm:$0xff]
        %v1405 = vld [vmem:[#allocation2 + $0x20] sm:$0xff]
        %v1406 = vld [vmem:[#allocation2 + $0x28] sm:$0xff]
        %v1407 = vld [vmem:[#allocation2 + $0x30] sm:$0xff]
        %v1408 = vld [vmem:[#allocation2 + $0x38] sm:$0xff]
        %v1409 = vld [vmem:[#allocation2 + $0x40] sm:$0xff]
        %v1410 = vld [vmem:[#allocation2 + $0x48] sm:$0xff]
        %v1411 = vld [vmem:[#allocation2 + $0x50] sm:$0xff]
        %v1412 = vld [vmem:[#allocation2 + $0x58] sm:$0xff]
        %v1413 = vld [vmem:[#allocation2 + $0x60] sm:$0xff]
        %v1414 = vld [vmem:[#allocation2 + $0x68] sm:$0xff]
        %v1415 = vld [vmem:[#allocation2 + $0x70] sm:$0xff]
        %v1416 = vld [vmem:[#allocation2 + $0x78] sm:$0xff]
        %v1417 = vld [vmem:[#allocation2 + $0x80] sm:$0xff]
        %v1418 = vld [vmem:[#allocation2 + $0x88] sm:$0xff]
        %v1419 = vld [vmem:[#allocation2 + $0x90] sm:$0xff]
        %v1420 = vld [vmem:[#allocation2 + $0x98] sm:$0xff]
        %v1421 = vld [vmem:[#allocation2 + $0xa0] sm:$0xff]
        %v1422 = vld [vmem:[#allocation2 + $0xa8] sm:$0xff]
        %v1423 = vld [vmem:[#allocation2 + $0xb0] sm:$0xff]
        %v1424 = vld [vmem:[#allocation2 + $0xb8] sm:$0xff]
        %v1425 = vld [vmem:[#allocation2 + $0xc0] sm:$0xff]
        %v1426 = vld [vmem:[#allocation2 + $0xc8] sm:$0xff]
        %v1427 = vld [vmem:[#allocation2 + $0xd0] sm:$0xff]
        %v1428 = vld [vmem:[#allocation2 + $0xd8] sm:$0xff]
        %v1429 = vld [vmem:[#allocation2 + $0xe0] sm:$0xff]
        %v1430 = vld [vmem:[#allocation2 + $0xe8] sm:$0xff]
        %v1431 = vld [vmem:[#allocation2 + $0xf0] sm:$0xff]
        %v1432 = vld [vmem:[#allocation2 + $0xf8] sm:$0xff]
        %v1433 = vld [vmem:[#allocation2 + $0x100] sm:$0xff]
        %v1434 = vld [vmem:[#allocation2 + $0x108] sm:$0xff]
        %v1435 = vld [vmem:[#allocation2 + $0x110] sm:$0xff]
        %v1436 = vld [vmem:[#allocation2 + $0x118] sm:$0xff]
        %v1437 = vld [vmem:[#allocation2 + $0x120] sm:$0xff]
        %v1438 = vld [vmem:[#allocation2 + $0x128] sm:$0xff]
        %v1439 = vld [vmem:[#allocation2 + $0x130] sm:$0xff]
        %v1440 = vld [vmem:[#allocation2 + $0x138] sm:$0xff]
        %v1441 = vld [vmem:[#allocation2 + $0x140] sm:$0xff]
        %v1442 = vld [vmem:[#allocation2 + $0x148] sm:$0xff]
        %v1443 = vld [vmem:[#allocation2 + $0x150] sm:$0xff]
        %v1444 = vld [vmem:[#allocation2 + $0x158] sm:$0xff]
        %v1445 = vld [vmem:[#allocation2 + $0x160] sm:$0xff]
        %v1446 = vld [vmem:[#allocation2 + $0x168] sm:$0xff]
        %v1447 = vld [vmem:[#allocation2 + $0x170] sm:$0xff]
        %v1448 = vld [vmem:[#allocation2 + $0x178] sm:$0xff]
        %v1449 = vld [vmem:[#allocation2 + $0x180] sm:$0xff]
        %v1450 = vld [vmem:[#allocation2 + $0x188] sm:$0xff]
        %v1451 = vld [vmem:[#allocation2 + $0x190] sm:$0xff]
        %v1452 = vld [vmem:[#allocation2 + $0x198] sm:$0xff]
        %v1453 = vld [vmem:[#allocation2 + $0x1a0] sm:$0xff]
        %v1454 = vld [vmem:[#allocation2 + $0x1a8] sm:$0xff]
        %v1455 = vld [vmem:[#allocation2 + $0x1b0] sm:$0xff]
        %v1456 = vld [vmem:[#allocation2 + $0x1b8] sm:$0xff]
        %v1457 = vld [vmem:[#allocation2 + $0x1c0] sm:$0xff]
        %v1458 = vld [vmem:[#allocation2 + $0x1c8] sm:$0xff]
        %v1459 = vld [vmem:[#allocation2 + $0x1d0] sm:$0xff]
        %v1460 = vld [vmem:[#allocation2 + $0x1d8] sm:$0xff]
        %v1461 = vld [vmem:[#allocation2 + $0x1e0] sm:$0xff]
        %v1462 = vld [vmem:[#allocation2 + $0x1e8] sm:$0xff]
        %v1463 = vld [vmem:[#allocation2 + $0x1f0] sm:$0xff]
        %v1464 = vld [vmem:[#allocation2 + $0x1f8] sm:$0xff]
        %v1465 = vld [vmem:[#allocation2 + $0x200] sm:$0xff]
        %v1466 = vld [vmem:[#allocation2 + $0x208] sm:$0xff]
        %v1467 = vld [vmem:[#allocation2 + $0x210] sm:$0xff]
        %v1468 = vld [vmem:[#allocation2 + $0x218] sm:$0xff]
        %v1469 = vld [vmem:[#allocation2 + $0x220] sm:$0xff]
        %v1470 = vld [vmem:[#allocation2 + $0x228] sm:$0xff]
        %v1471 = vld [vmem:[#allocation2 + $0x230] sm:$0xff]
        %v1472 = vld [vmem:[#allocation2 + $0x238] sm:$0xff]
        %v1545 = vunpack.c.l.b16 %v1401
        %v1546 = vunpack.c.h.b16 %v1401
        %v1547 = vunpack.c.l.b16 %v1402
        %v1548 = vunpack.c.h.b16 %v1402
        %v1549 = vunpack.c.l.b16 %v1403
        %v1550 = vunpack.c.h.b16 %v1403
        %v1551 = vunpack.c.l.b16 %v1404
        %v1552 = vunpack.c.h.b16 %v1404
        %v1553 = vunpack.c.l.b16 %v1405
        %v1554 = vunpack.c.h.b16 %v1405
        %v1555 = vunpack.c.l.b16 %v1406
        %v1556 = vunpack.c.h.b16 %v1406
        %v1557 = vunpack.c.l.b16 %v1407
        %v1558 = vunpack.c.h.b16 %v1407
        %v1559 = vunpack.c.l.b16 %v1408
        %v1560 = vunpack.c.h.b16 %v1408
        %v1561 = vunpack.c.l.b16 %v1409
        %v1562 = vunpack.c.h.b16 %v1409
        %v1563 = vunpack.c.l.b16 %v1410
        %v1564 = vunpack.c.h.b16 %v1410
        %v1565 = vunpack.c.l.b16 %v1411
        %v1566 = vunpack.c.h.b16 %v1411
        %v1567 = vunpack.c.l.b16 %v1412
        %v1568 = vunpack.c.h.b16 %v1412
        %v1569 = vunpack.c.l.b16 %v1413
        %v1570 = vunpack.c.h.b16 %v1413
        %v1571 = vunpack.c.l.b16 %v1414
        %v1572 = vunpack.c.h.b16 %v1414
        %v1573 = vunpack.c.l.b16 %v1415
        %v1574 = vunpack.c.h.b16 %v1415
        %v1575 = vunpack.c.l.b16 %v1416
        %v1576 = vunpack.c.h.b16 %v1416
        %v1577 = vunpack.c.l.b16 %v1417
        %v1578 = vunpack.c.h.b16 %v1417
        %v1579 = vunpack.c.l.b16 %v1418
        %v1580 = vunpack.c.h.b16 %v1418
        %v1581 = vunpack.c.l.b16 %v1419
        %v1582 = vunpack.c.h.b16 %v1419
        %v1583 = vunpack.c.l.b16 %v1420
        %v1584 = vunpack.c.h.b16 %v1420
        %v1585 = vunpack.c.l.b16 %v1421
        %v1586 = vunpack.c.h.b16 %v1421
        %v1587 = vunpack.c.l.b16 %v1422
        %v1588 = vunpack.c.h.b16 %v1422
        %v1589 = vunpack.c.l.b16 %v1423
        %v1590 = vunpack.c.h.b16 %v1423
        %v1591 = vunpack.c.l.b16 %v1424
        %v1592 = vunpack.c.h.b16 %v1424
        %v1593 = vunpack.c.l.b16 %v1425
        %v1594 = vunpack.c.h.b16 %v1425
        %v1595 = vunpack.c.l.b16 %v1426
        %v1596 = vunpack.c.h.b16 %v1426
        %v1597 = vunpack.c.l.b16 %v1427
        %v1598 = vunpack.c.h.b16 %v1427
        %v1599 = vunpack.c.l.b16 %v1428
        %v1600 = vunpack.c.h.b16 %v1428
        %v1601 = vunpack.c.l.b16 %v1429
        %v1602 = vunpack.c.h.b16 %v1429
        %v1603 = vunpack.c.l.b16 %v1430
        %v1604 = vunpack.c.h.b16 %v1430
        %v1605 = vunpack.c.l.b16 %v1431
        %v1606 = vunpack.c.h.b16 %v1431
        %v1607 = vunpack.c.l.b16 %v1432
        %v1608 = vunpack.c.h.b16 %v1432
        %v1609 = vunpack.c.l.b16 %v1433
        %v1610 = vunpack.c.h.b16 %v1433
        %v1611 = vunpack.c.l.b16 %v1434
        %v1612 = vunpack.c.h.b16 %v1434
        %v1613 = vunpack.c.l.b16 %v1435
        %v1614 = vunpack.c.h.b16 %v1435
        %v1615 = vunpack.c.l.b16 %v1436
        %v1616 = vunpack.c.h.b16 %v1436
        %v1617 = vunpack.c.l.b16 %v1437
        %v1618 = vunpack.c.h.b16 %v1437
        %v1619 = vunpack.c.l.b16 %v1438
        %v1620 = vunpack.c.h.b16 %v1438
        %v1621 = vunpack.c.l.b16 %v1439
        %v1622 = vunpack.c.h.b16 %v1439
        %v1623 = vunpack.c.l.b16 %v1440
        %v1624 = vunpack.c.h.b16 %v1440
        %v1625 = vunpack.c.l.b16 %v1441
        %v1626 = vunpack.c.h.b16 %v1441
        %v1627 = vunpack.c.l.b16 %v1442
        %v1628 = vunpack.c.h.b16 %v1442
        %v1629 = vunpack.c.l.b16 %v1443
        %v1630 = vunpack.c.h.b16 %v1443
        %v1631 = vunpack.c.l.b16 %v1444
        %v1632 = vunpack.c.h.b16 %v1444
        %v1633 = vunpack.c.l.b16 %v1445
        %v1634 = vunpack.c.h.b16 %v1445
        %v1635 = vunpack.c.l.b16 %v1446
        %v1636 = vunpack.c.h.b16 %v1446
        %v1637 = vunpack.c.l.b16 %v1447
        %v1638 = vunpack.c.h.b16 %v1447
        %v1639 = vunpack.c.l.b16 %v1448
        %v1640 = vunpack.c.h.b16 %v1448
        %v1641 = vunpack.c.l.b16 %v1449
        %v1642 = vunpack.c.h.b16 %v1449
        %v1643 = vunpack.c.l.b16 %v1450
        %v1644 = vunpack.c.h.b16 %v1450
        %v1645 = vunpack.c.l.b16 %v1451
        %v1646 = vunpack.c.h.b16 %v1451
        %v1647 = vunpack.c.l.b16 %v1452
        %v1648 = vunpack.c.h.b16 %v1452
        %v1649 = vunpack.c.l.b16 %v1453
        %v1650 = vunpack.c.h.b16 %v1453
        %v1651 = vunpack.c.l.b16 %v1454
        %v1652 = vunpack.c.h.b16 %v1454
        %v1653 = vunpack.c.l.b16 %v1455
        %v1654 = vunpack.c.h.b16 %v1455
        %v1655 = vunpack.c.l.b16 %v1456
        %v1656 = vunpack.c.h.b16 %v1456
        %v1657 = vunpack.c.l.b16 %v1457
        %v1658 = vunpack.c.h.b16 %v1457
        %v1659 = vunpack.c.l.b16 %v1458
        %v1660 = vunpack.c.h.b16 %v1458
        %v1661 = vunpack.c.l.b16 %v1459
        %v1662 = vunpack.c.h.b16 %v1459
        %v1663 = vunpack.c.l.b16 %v1460
        %v1664 = vunpack.c.h.b16 %v1460
        %v1665 = vunpack.c.l.b16 %v1461
        %v1666 = vunpack.c.h.b16 %v1461
        %v1667 = vunpack.c.l.b16 %v1462
        %v1668 = vunpack.c.h.b16 %v1462
        %v1669 = vunpack.c.l.b16 %v1463
        %v1670 = vunpack.c.h.b16 %v1463
        %v1671 = vunpack.c.l.b16 %v1464
        %v1672 = vunpack.c.h.b16 %v1464
        %v1673 = vunpack.c.l.b16 %v1465
        %v1674 = vunpack.c.h.b16 %v1465
        %v1675 = vunpack.c.l.b16 %v1466
        %v1676 = vunpack.c.h.b16 %v1466
        %v1677 = vunpack.c.l.b16 %v1467
        %v1678 = vunpack.c.h.b16 %v1467
        %v1679 = vunpack.c.l.b16 %v1468
        %v1680 = vunpack.c.h.b16 %v1468
        %v1681 = vunpack.c.l.b16 %v1469
        %v1682 = vunpack.c.h.b16 %v1469
        %v1683 = vunpack.c.l.b16 %v1470
        %v1684 = vunpack.c.h.b16 %v1470
        %v1685 = vunpack.c.l.b16 %v1471
        %v1686 = vunpack.c.h.b16 %v1471
        %v1687 = vunpack.c.l.b16 %v1472
        %v1688 = vunpack.c.h.b16 %v1472
        %v1689 = vpack.c.b16 %v1549, %v1545
        %v1690 = vpack.c.b16 %v1550, %v1546
        %v1691 = vpack.c.b16 %v1551, %v1547
        %v1692 = vpack.c.b16 %v1552, %v1548
        %v1693 = vpack.c.b16 %v1557, %v1553
        %v1694 = vpack.c.b16 %v1558, %v1554
        %v1695 = vpack.c.b16 %v1559, %v1555
        %v1696 = vpack.c.b16 %v1560, %v1556
        %v1697 = vpack.c.b16 %v1565, %v1561
        %v1698 = vpack.c.b16 %v1566, %v1562
        %v1699 = vpack.c.b16 %v1567, %v1563
        %v1700 = vpack.c.b16 %v1568, %v1564
        %v1701 = vpack.c.b16 %v1573, %v1569
        %v1702 = vpack.c.b16 %v1574, %v1570
        %v1703 = vpack.c.b16 %v1575, %v1571
        %v1704 = vpack.c.b16 %v1576, %v1572
        %v1705 = vpack.c.b16 %v1581, %v1577
        %v1706 = vpack.c.b16 %v1582, %v1578
        %v1707 = vpack.c.b16 %v1583, %v1579
        %v1708 = vpack.c.b16 %v1584, %v1580
        %v1709 = vpack.c.b16 %v1589, %v1585
        %v1710 = vpack.c.b16 %v1590, %v1586
        %v1711 = vpack.c.b16 %v1591, %v1587
        %v1712 = vpack.c.b16 %v1592, %v1588
        %v1713 = vpack.c.b16 %v1597, %v1593
        %v1714 = vpack.c.b16 %v1598, %v1594
        %v1715 = vpack.c.b16 %v1599, %v1595
        %v1716 = vpack.c.b16 %v1600, %v1596
        %v1717 = vpack.c.b16 %v1605, %v1601
        %v1718 = vpack.c.b16 %v1606, %v1602
        %v1719 = vpack.c.b16 %v1607, %v1603
        %v1720 = vpack.c.b16 %v1608, %v1604
        %v1721 = vpack.c.b16 %v1613, %v1609
        %v1722 = vpack.c.b16 %v1614, %v1610
        %v1723 = vpack.c.b16 %v1615, %v1611
        %v1724 = vpack.c.b16 %v1616, %v1612
        %v1725 = vpack.c.b16 %v1621, %v1617
        %v1726 = vpack.c.b16 %v1622, %v1618
        %v1727 = vpack.c.b16 %v1623, %v1619
        %v1728 = vpack.c.b16 %v1624, %v1620
        %v1729 = vpack.c.b16 %v1629, %v1625
        %v1730 = vpack.c.b16 %v1630, %v1626
        %v1731 = vpack.c.b16 %v1631, %v1627
        %v1732 = vpack.c.b16 %v1632, %v1628
        %v1733 = vpack.c.b16 %v1637, %v1633
        %v1734 = vpack.c.b16 %v1638, %v1634
        %v1735 = vpack.c.b16 %v1639, %v1635
        %v1736 = vpack.c.b16 %v1640, %v1636
        %v1737 = vpack.c.b16 %v1645, %v1641
        %v1738 = vpack.c.b16 %v1646, %v1642
        %v1739 = vpack.c.b16 %v1647, %v1643
        %v1740 = vpack.c.b16 %v1648, %v1644
        %v1741 = vpack.c.b16 %v1653, %v1649
        %v1742 = vpack.c.b16 %v1654, %v1650
        %v1743 = vpack.c.b16 %v1655, %v1651
        %v1744 = vpack.c.b16 %v1656, %v1652
        %v1745 = vpack.c.b16 %v1661, %v1657
        %v1746 = vpack.c.b16 %v1662, %v1658
        %v1747 = vpack.c.b16 %v1663, %v1659
        %v1748 = vpack.c.b16 %v1664, %v1660
        %v1749 = vpack.c.b16 %v1669, %v1665
        %v1750 = vpack.c.b16 %v1670, %v1666
        %v1751 = vpack.c.b16 %v1671, %v1667
        %v1752 = vpack.c.b16 %v1672, %v1668
        %v1753 = vpack.c.b16 %v1677, %v1673
        %v1754 = vpack.c.b16 %v1678, %v1674
        %v1755 = vpack.c.b16 %v1679, %v1675
        %v1756 = vpack.c.b16 %v1680, %v1676
        %v1757 = vpack.c.b16 %v1685, %v1681
        %v1758 = vpack.c.b16 %v1686, %v1682
        %v1759 = vpack.c.b16 %v1687, %v1683
        %v1760 = vpack.c.b16 %v1688, %v1684
        %vm1833 = vcmask 261120
        %v1835 = vsel %vm1833, %v1399, 0
        %1837 = vmatprep.subr.bf16.mxu0 %v1690
        %1838 = vmatpush1.bf16.msra.mxu0 %v1689
        %1839 = vmatprep.subr.bf16.mxu0 %v1694
        %1840 = vmatpush1.bf16.msra.mxu0 %v1693
        %1841 = vmatprep.subr.bf16.mxu0 %v1698
        %1842 = vmatpush1.bf16.msra.mxu0 %v1697
        %1843 = vmatprep.subr.bf16.mxu0 %v1702
        %1844 = vmatpush1.bf16.msra.mxu0 %v1701
        %1845 = vmatprep.subr.bf16.mxu0 %v1706
        %1846 = vmatpush1.bf16.msra.mxu0 %v1705
        %1847 = vmatprep.subr.bf16.mxu0 %v1710
        %1848 = vmatpush1.bf16.msra.mxu0 %v1709
        %1849 = vmatprep.subr.bf16.mxu0 %v1714
        %1850 = vmatpush1.bf16.msra.mxu0 %v1713
        %1851 = vmatprep.subr.bf16.mxu0 %v1718
        %1852 = vmatpush1.bf16.msra.mxu0 %v1717
        %1853 = vmatprep.subr.bf16.mxu0 %v1722
        %1854 = vmatpush1.bf16.msra.mxu0 %v1721
        %1855 = vmatprep.subr.bf16.mxu0 %v1726
        %1856 = vmatpush1.bf16.msra.mxu0 %v1725
        %1857 = vmatprep.subr.bf16.mxu0 %v1730
        %1858 = vmatpush1.bf16.msra.mxu0 %v1729
        %1859 = vmatprep.subr.bf16.mxu0 %v1734
        %1860 = vmatpush1.bf16.msra.mxu0 %v1733
        %1861 = vmatprep.subr.bf16.mxu0 %v1738
        %1862 = vmatpush1.bf16.msra.mxu0 %v1737
        %1863 = vmatprep.subr.bf16.mxu0 %v1742
        %1864 = vmatpush1.bf16.msra.mxu0 %v1741
        %1865 = vmatprep.subr.bf16.mxu0 %v1746
        %1866 = vmatpush1.bf16.msra.mxu0 %v1745
        %1867 = vmatprep.subr.bf16.mxu0 %v1750
        %1868 = vmatpush1.bf16.msra.mxu0 %v1749
        %1869 = vmatprep.mubr.bf16.mxu0 %v1398
        %1870 = vmatmul.mubr.bf16.gmra.mrb[0].mxu0 %v1397
        %v1871 = vpop.f32.mrb[0].mxu0
        %v1872 = vadd.f32 0.0, %v1871
        %v1873 = vpop.f32.mrb[0].mxu0
        %v1874 = vadd.f32 0.0, %v1873
        %v1875 = vpop.f32.mrb[0].mxu0
        %v1876 = vpop.f32.mrb[0].mxu0
        %1877 = vdwg.mxu0
        %1878 = vmatprep.subr.bf16.mxu0 %v1754
        %1879 = vmatpush1.bf16.msra.mxu0 %v1753
        %1880 = vmatprep.subr.bf16.mxu0 %v1758
        %1881 = vmatpush1.bf16.msra.mxu0 %v1757
        %1882 = vmatprep.subr.bf16.mxu0 0
        %1883 = vmatpush1.bf16.msra.mxu0 0
        %1884 = vmatprep.subr.bf16.mxu0 0
        %1885 = vmatpush1.bf16.msra.mxu0 0
        %1886 = vmatprep.subr.bf16.mxu0 0
        %1887 = vmatpush1.bf16.msra.mxu0 0
        %1888 = vmatprep.subr.bf16.mxu0 0
        %1889 = vmatpush1.bf16.msra.mxu0 0
        %1890 = vmatprep.subr.bf16.mxu0 0
        %1891 = vmatpush1.bf16.msra.mxu0 0
        %1892 = vmatprep.subr.bf16.mxu0 0
        %1893 = vmatpush1.bf16.msra.mxu0 0
        %1894 = vmatprep.subr.bf16.mxu0 0
        %1895 = vmatpush1.bf16.msra.mxu0 0
        %1896 = vmatprep.subr.bf16.mxu0 0
        %1897 = vmatpush1.bf16.msra.mxu0 0
        %1898 = vmatprep.subr.bf16.mxu0 0
        %1899 = vmatpush1.bf16.msra.mxu0 0
        %1900 = vmatprep.subr.bf16.mxu0 0
        %1901 = vmatpush1.bf16.msra.mxu0 0
        %1902 = vmatprep.subr.bf16.mxu0 0
        %1903 = vmatpush1.bf16.msra.mxu0 0
        %1904 = vmatprep.subr.bf16.mxu0 0
        %1905 = vmatpush1.bf16.msra.mxu0 0
        %1906 = vmatprep.subr.bf16.mxu0 0
        %1907 = vmatpush1.bf16.msra.mxu0 0
        %1908 = vmatprep.subr.bf16.mxu0 0
        %1909 = vmatpush1.bf16.msra.mxu0 0
        %1910 = vmatprep.mubr.bf16.mxu0 0
        %1911 = vmatmul.mubr.bf16.gmra.mrb[0].mxu0 %v1835
        %v1912 = vpop.f32.mrb[0].mxu0
        %v1913 = vadd.f32 %v1872, %v1912
        %v1914 = vpop.f32.mrb[0].mxu0
        %v1915 = vadd.f32 %v1874, %v1914
        %v1916 = vpop.f32.mrb[0].mxu0
        %v1917 = vpop.f32.mrb[0].mxu0
        %1918 = vdwg.mxu0
        %1919 = vmatprep.subr.bf16.mxu0 %v1692
        %1920 = vmatpush1.bf16.msra.mxu0 %v1691
        %1921 = vmatprep.subr.bf16.mxu0 %v1696
        %1922 = vmatpush1.bf16.msra.mxu0 %v1695
        %1923 = vmatprep.subr.bf16.mxu0 %v1700
        %1924 = vmatpush1.bf16.msra.mxu0 %v1699
        %1925 = vmatprep.subr.bf16.mxu0 %v1704
        %1926 = vmatpush1.bf16.msra.mxu0 %v1703
        %1927 = vmatprep.subr.bf16.mxu0 %v1708
        %1928 = vmatpush1.bf16.msra.mxu0 %v1707
        %1929 = vmatprep.subr.bf16.mxu0 %v1712
        %1930 = vmatpush1.bf16.msra.mxu0 %v1711
        %1931 = vmatprep.subr.bf16.mxu0 %v1716
        %1932 = vmatpush1.bf16.msra.mxu0 %v1715
        %1933 = vmatprep.subr.bf16.mxu0 %v1720
        %1934 = vmatpush1.bf16.msra.mxu0 %v1719
        %1935 = vmatprep.subr.bf16.mxu0 %v1724
        %1936 = vmatpush1.bf16.msra.mxu0 %v1723
        %1937 = vmatprep.subr.bf16.mxu0 %v1728
        %1938 = vmatpush1.bf16.msra.mxu0 %v1727
        %1939 = vmatprep.subr.bf16.mxu0 %v1732
        %1940 = vmatpush1.bf16.msra.mxu0 %v1731
        %1941 = vmatprep.subr.bf16.mxu0 %v1736
        %1942 = vmatpush1.bf16.msra.mxu0 %v1735
        %1943 = vmatprep.subr.bf16.mxu0 %v1740
        %1944 = vmatpush1.bf16.msra.mxu0 %v1739
        %1945 = vmatprep.subr.bf16.mxu0 %v1744
        %1946 = vmatpush1.bf16.msra.mxu0 %v1743
        %1947 = vmatprep.subr.bf16.mxu0 %v1748
        %1948 = vmatpush1.bf16.msra.mxu0 %v1747
        %1949 = vmatprep.subr.bf16.mxu0 %v1752
        %1950 = vmatpush1.bf16.msra.mxu0 %v1751
        %1951 = vmatprep.mubr.bf16.mxu0 %v1398
        %1952 = vmatmul.mubr.bf16.gmra.mrb[0].mxu0 %v1397
        %v1953 = vpop.f32.mrb[0].mxu0
        %v1954 = vadd.f32 0.0, %v1953
        %v1955 = vpop.f32.mrb[0].mxu0
        %v1956 = vadd.f32 0.0, %v1955
        %v1957 = vpop.f32.mrb[0].mxu0
        %v1958 = vpop.f32.mrb[0].mxu0
        %1959 = vdwg.mxu0
        %1960 = vmatprep.subr.bf16.mxu0 %v1756
        %1961 = vmatpush1.bf16.msra.mxu0 %v1755
        %1962 = vmatprep.subr.bf16.mxu0 %v1760
        %1963 = vmatpush1.bf16.msra.mxu0 %v1759
        %1964 = vmatprep.subr.bf16.mxu0 0
        %1965 = vmatpush1.bf16.msra.mxu0 0
        %1966 = vmatprep.subr.bf16.mxu0 0
        %1967 = vmatpush1.bf16.msra.mxu0 0
        %1968 = vmatprep.subr.bf16.mxu0 0
        %1969 = vmatpush1.bf16.msra.mxu0 0
        %1970 = vmatprep.subr.bf16.mxu0 0
        %1971 = vmatpush1.bf16.msra.mxu0 0
        %1972 = vmatprep.subr.bf16.mxu0 0
        %1973 = vmatpush1.bf16.msra.mxu0 0
        %1974 = vmatprep.subr.bf16.mxu0 0
        %1975 = vmatpush1.bf16.msra.mxu0 0
        %1976 = vmatprep.subr.bf16.mxu0 0
        %1977 = vmatpush1.bf16.msra.mxu0 0
        %1978 = vmatprep.subr.bf16.mxu0 0
        %1979 = vmatpush1.bf16.msra.mxu0 0
        %1980 = vmatprep.subr.bf16.mxu0 0
        %1981 = vmatpush1.bf16.msra.mxu0 0
        %1982 = vmatprep.subr.bf16.mxu0 0
        %1983 = vmatpush1.bf16.msra.mxu0 0
        %1984 = vmatprep.subr.bf16.mxu0 0
        %1985 = vmatpush1.bf16.msra.mxu0 0
        %1986 = vmatprep.subr.bf16.mxu0 0
        %1987 = vmatpush1.bf16.msra.mxu0 0
        %1988 = vmatprep.subr.bf16.mxu0 0
        %1989 = vmatpush1.bf16.msra.mxu0 0
        %1990 = vmatprep.subr.bf16.mxu0 0
        %1991 = vmatpush1.bf16.msra.mxu0 0
        %1992 = vmatprep.mubr.bf16.mxu0 0
        %1993 = vmatmul.mubr.bf16.gmra.mrb[0].mxu0 %v1835
        %v1994 = vpop.f32.mrb[0].mxu0
        %v1995 = vadd.f32 %v1954, %v1994
        %v1996 = vpop.f32.mrb[0].mxu0
        %v1997 = vadd.f32 %v1956, %v1996
        %v1998 = vpop.f32.mrb[0].mxu0
        %v1999 = vpop.f32.mrb[0].mxu0
        %2000 = vdwg.mxu0
        %v2005 = vcombine.low %v1913, %v1915
        %v2006 = vcombine.low %v1995, %v1997
        %v2008 = vunpack.c.l.s4 1966171168
        %v2009 = vunpack.c.0.s8 %v2008
        %v2010 = vlaneseq
        %v2011 = vshrl.u32 %v2010, 7
        %v2012 = vsub.s32 %v2009, %v2011
        %v2013 = vrot.slane %v2005, %v2012
        %v2015 = vunpack.c.l.s4 1966171168
        %v2016 = vunpack.c.0.s8 %v2015
        %v2017 = vlaneseq
        %v2018 = vshrl.u32 %v2017, 7
        %v2019 = vsub.s32 %v2016, %v2018
        %v2020 = vrot.slane %v2006, %v2019
        %v2021 = vcombine.low %v2013, %v2020
        %v2023 = vunpack.c.l.s4 1966171168
        %v2024 = vunpack.c.0.s8 %v2023
        %v2025 = vlaneseq
        %v2026 = vshrl.u32 %v2025, 7
        %v2027 = vsub.s32 %v2024, %v2026
        %v2028 = vrot.slane %v2021, %v2027
        %v2030 = vadd.f32 %v1400, %v2028
        %s2031 = scalar_lea.vmem [#allocation2], 576
        %v2032 = vld [vmem:[%s2031] sm:$0xff]
        %v2033 = vld [vmem:[%s2031 + $0x8] sm:$0xff]
        %v2034 = vld [vmem:[%s2031 + $0x10] sm:$0xff]
        %v2035 = vld [vmem:[%s2031 + $0x18] sm:$0xff]
        %v2036 = vld [vmem:[%s2031 + $0x20] sm:$0xff]
        %v2037 = vld [vmem:[%s2031 + $0x28] sm:$0xff]
        %v2038 = vld [vmem:[%s2031 + $0x30] sm:$0xff]
        %v2039 = vld [vmem:[%s2031 + $0x38] sm:$0xff]
        %v2040 = vld [vmem:[%s2031 + $0x40] sm:$0xff]
        %v2041 = vld [vmem:[%s2031 + $0x48] sm:$0xff]
        %v2042 = vld [vmem:[%s2031 + $0x50] sm:$0xff]
        %v2043 = vld [vmem:[%s2031 + $0x58] sm:$0xff]
        %v2044 = vld [vmem:[%s2031 + $0x60] sm:$0xff]
        %v2045 = vld [vmem:[%s2031 + $0x68] sm:$0xff]
        %v2046 = vld [vmem:[%s2031 + $0x70] sm:$0xff]
        %v2047 = vld [vmem:[%s2031 + $0x78] sm:$0xff]
        %v2048 = vld [vmem:[%s2031 + $0x80] sm:$0xff]
        %v2049 = vld [vmem:[%s2031 + $0x88] sm:$0xff]
        %v2050 = vld [vmem:[%s2031 + $0x90] sm:$0xff]
        %v2051 = vld [vmem:[%s2031 + $0x98] sm:$0xff]
        %v2052 = vld [vmem:[%s2031 + $0xa0] sm:$0xff]
        %v2053 = vld [vmem:[%s2031 + $0xa8] sm:$0xff]
        %v2054 = vld [vmem:[%s2031 + $0xb0] sm:$0xff]
        %v2055 = vld [vmem:[%s2031 + $0xb8] sm:$0xff]
        %v2056 = vld [vmem:[%s2031 + $0xc0] sm:$0xff]
        %v2057 = vld [vmem:[%s2031 + $0xc8] sm:$0xff]
        %v2058 = vld [vmem:[%s2031 + $0xd0] sm:$0xff]
        %v2059 = vld [vmem:[%s2031 + $0xd8] sm:$0xff]
        %v2060 = vld [vmem:[%s2031 + $0xe0] sm:$0xff]
        %v2061 = vld [vmem:[%s2031 + $0xe8] sm:$0xff]
        %v2062 = vld [vmem:[%s2031 + $0xf0] sm:$0xff]
        %v2063 = vld [vmem:[%s2031 + $0xf8] sm:$0xff]
        %v2064 = vld [vmem:[%s2031 + $0x100] sm:$0xff]
        %v2065 = vld [vmem:[%s2031 + $0x108] sm:$0xff]
        %v2066 = vld [vmem:[%s2031 + $0x110] sm:$0xff]
        %v2067 = vld [vmem:[%s2031 + $0x118] sm:$0xff]
        %v2068 = vld [vmem:[%s2031 + $0x120] sm:$0xff]
        %v2069 = vld [vmem:[%s2031 + $0x128] sm:$0xff]
        %v2070 = vld [vmem:[%s2031 + $0x130] sm:$0xff]
        %v2071 = vld [vmem:[%s2031 + $0x138] sm:$0xff]
        %v2072 = vld [vmem:[%s2031 + $0x140] sm:$0xff]
        %v2073 = vld [vmem:[%s2031 + $0x148] sm:$0xff]
        %v2074 = vld [vmem:[%s2031 + $0x150] sm:$0xff]
        %v2075 = vld [vmem:[%s2031 + $0x158] sm:$0xff]
        %v2076 = vld [vmem:[%s2031 + $0x160] sm:$0xff]
        %v2077 = vld [vmem:[%s2031 + $0x168] sm:$0xff]
        %v2078 = vld [vmem:[%s2031 + $0x170] sm:$0xff]
        %v2079 = vld [vmem:[%s2031 + $0x178] sm:$0xff]
        %v2080 = vld [vmem:[%s2031 + $0x180] sm:$0xff]
        %v2081 = vld [vmem:[%s2031 + $0x188] sm:$0xff]
        %v2082 = vld [vmem:[%s2031 + $0x190] sm:$0xff]
        %v2083 = vld [vmem:[%s2031 + $0x198] sm:$0xff]
        %v2084 = vld [vmem:[%s2031 + $0x1a0] sm:$0xff]
        %v2085 = vld [vmem:[%s2031 + $0x1a8] sm:$0xff]
        %v2086 = vld [vmem:[%s2031 + $0x1b0] sm:$0xff]
        %v2087 = vld [vmem:[%s2031 + $0x1b8] sm:$0xff]
        %v2088 = vld [vmem:[%s2031 + $0x1c0] sm:$0xff]
        %v2089 = vld [vmem:[%s2031 + $0x1c8] sm:$0xff]
        %v2090 = vld [vmem:[%s2031 + $0x1d0] sm:$0xff]
        %v2091 = vld [vmem:[%s2031 + $0x1d8] sm:$0xff]
        %v2092 = vld [vmem:[%s2031 + $0x1e0] sm:$0xff]
        %v2093 = vld [vmem:[%s2031 + $0x1e8] sm:$0xff]
        %v2094 = vld [vmem:[%s2031 + $0x1f0] sm:$0xff]
        %v2095 = vld [vmem:[%s2031 + $0x1f8] sm:$0xff]
        %v2096 = vld [vmem:[%s2031 + $0x200] sm:$0xff]
        %v2097 = vld [vmem:[%s2031 + $0x208] sm:$0xff]
        %v2098 = vld [vmem:[%s2031 + $0x210] sm:$0xff]
        %v2099 = vld [vmem:[%s2031 + $0x218] sm:$0xff]
        %v2100 = vld [vmem:[%s2031 + $0x220] sm:$0xff]
        %v2101 = vld [vmem:[%s2031 + $0x228] sm:$0xff]
        %v2102 = vld [vmem:[%s2031 + $0x230] sm:$0xff]
        %v2103 = vld [vmem:[%s2031 + $0x238] sm:$0xff]
        %v2105 = vshrl.u32 %v1397, 16
        %v2108 = vshrl.u32 %v1398, 16
        %v2110 = vshrl.u32 %v1399, 16
        %v2186 = vunpack.c.l.b16 %v2032
        %v2187 = vunpack.c.h.b16 %v2032
        %v2188 = vunpack.c.l.b16 %v2033
        %v2189 = vunpack.c.h.b16 %v2033
        %v2190 = vunpack.c.l.b16 %v2034
        %v2191 = vunpack.c.h.b16 %v2034
        %v2192 = vunpack.c.l.b16 %v2035
        %v2193 = vunpack.c.h.b16 %v2035
        %v2194 = vunpack.c.l.b16 %v2036
        %v2195 = vunpack.c.h.b16 %v2036
        %v2196 = vunpack.c.l.b16 %v2037
        %v2197 = vunpack.c.h.b16 %v2037
        %v2198 = vunpack.c.l.b16 %v2038
        %v2199 = vunpack.c.h.b16 %v2038
        %v2200 = vunpack.c.l.b16 %v2039
        %v2201 = vunpack.c.h.b16 %v2039
        %v2202 = vunpack.c.l.b16 %v2040
        %v2203 = vunpack.c.h.b16 %v2040
        %v2204 = vunpack.c.l.b16 %v2041
        %v2205 = vunpack.c.h.b16 %v2041
        %v2206 = vunpack.c.l.b16 %v2042
        %v2207 = vunpack.c.h.b16 %v2042
        %v2208 = vunpack.c.l.b16 %v2043
        %v2209 = vunpack.c.h.b16 %v2043
        %v2210 = vunpack.c.l.b16 %v2044
        %v2211 = vunpack.c.h.b16 %v2044
        %v2212 = vunpack.c.l.b16 %v2045
        %v2213 = vunpack.c.h.b16 %v2045
        %v2214 = vunpack.c.l.b16 %v2046
        %v2215 = vunpack.c.h.b16 %v2046
        %v2216 = vunpack.c.l.b16 %v2047
        %v2217 = vunpack.c.h.b16 %v2047
        %v2218 = vunpack.c.l.b16 %v2048
        %v2219 = vunpack.c.h.b16 %v2048
        %v2220 = vunpack.c.l.b16 %v2049
        %v2221 = vunpack.c.h.b16 %v2049
        %v2222 = vunpack.c.l.b16 %v2050
        %v2223 = vunpack.c.h.b16 %v2050
        %v2224 = vunpack.c.l.b16 %v2051
        %v2225 = vunpack.c.h.b16 %v2051
        %v2226 = vunpack.c.l.b16 %v2052
        %v2227 = vunpack.c.h.b16 %v2052
        %v2228 = vunpack.c.l.b16 %v2053
        %v2229 = vunpack.c.h.b16 %v2053
        %v2230 = vunpack.c.l.b16 %v2054
        %v2231 = vunpack.c.h.b16 %v2054
        %v2232 = vunpack.c.l.b16 %v2055
        %v2233 = vunpack.c.h.b16 %v2055
        %v2234 = vunpack.c.l.b16 %v2056
        %v2235 = vunpack.c.h.b16 %v2056
        %v2236 = vunpack.c.l.b16 %v2057
        %v2237 = vunpack.c.h.b16 %v2057
        %v2238 = vunpack.c.l.b16 %v2058
        %v2239 = vunpack.c.h.b16 %v2058
        %v2240 = vunpack.c.l.b16 %v2059
        %v2241 = vunpack.c.h.b16 %v2059
        %v2242 = vunpack.c.l.b16 %v2060
        %v2243 = vunpack.c.h.b16 %v2060
        %v2244 = vunpack.c.l.b16 %v2061
        %v2245 = vunpack.c.h.b16 %v2061
        %v2246 = vunpack.c.l.b16 %v2062
        %v2247 = vunpack.c.h.b16 %v2062
        %v2248 = vunpack.c.l.b16 %v2063
        %v2249 = vunpack.c.h.b16 %v2063
        %v2250 = vunpack.c.l.b16 %v2064
        %v2251 = vunpack.c.h.b16 %v2064
        %v2252 = vunpack.c.l.b16 %v2065
        %v2253 = vunpack.c.h.b16 %v2065
        %v2254 = vunpack.c.l.b16 %v2066
        %v2255 = vunpack.c.h.b16 %v2066
        %v2256 = vunpack.c.l.b16 %v2067
        %v2257 = vunpack.c.h.b16 %v2067
        %v2258 = vunpack.c.l.b16 %v2068
        %v2259 = vunpack.c.h.b16 %v2068
        %v2260 = vunpack.c.l.b16 %v2069
        %v2261 = vunpack.c.h.b16 %v2069
        %v2262 = vunpack.c.l.b16 %v2070
        %v2263 = vunpack.c.h.b16 %v2070
        %v2264 = vunpack.c.l.b16 %v2071
        %v2265 = vunpack.c.h.b16 %v2071
        %v2266 = vunpack.c.l.b16 %v2072
        %v2267 = vunpack.c.h.b16 %v2072
        %v2268 = vunpack.c.l.b16 %v2073
        %v2269 = vunpack.c.h.b16 %v2073
        %v2270 = vunpack.c.l.b16 %v2074
        %v2271 = vunpack.c.h.b16 %v2074
        %v2272 = vunpack.c.l.b16 %v2075
        %v2273 = vunpack.c.h.b16 %v2075
        %v2274 = vunpack.c.l.b16 %v2076
        %v2275 = vunpack.c.h.b16 %v2076
        %v2276 = vunpack.c.l.b16 %v2077
        %v2277 = vunpack.c.h.b16 %v2077
        %v2278 = vunpack.c.l.b16 %v2078
        %v2279 = vunpack.c.h.b16 %v2078
        %v2280 = vunpack.c.l.b16 %v2079
        %v2281 = vunpack.c.h.b16 %v2079
        %v2282 = vunpack.c.l.b16 %v2080
        %v2283 = vunpack.c.h.b16 %v2080
        %v2284 = vunpack.c.l.b16 %v2081
        %v2285 = vunpack.c.h.b16 %v2081
        %v2286 = vunpack.c.l.b16 %v2082
        %v2287 = vunpack.c.h.b16 %v2082
        %v2288 = vunpack.c.l.b16 %v2083
        %v2289 = vunpack.c.h.b16 %v2083
        %v2290 = vunpack.c.l.b16 %v2084
        %v2291 = vunpack.c.h.b16 %v2084
        %v2292 = vunpack.c.l.b16 %v2085
        %v2293 = vunpack.c.h.b16 %v2085
        %v2294 = vunpack.c.l.b16 %v2086
        %v2295 = vunpack.c.h.b16 %v2086
        %v2296 = vunpack.c.l.b16 %v2087
        %v2297 = vunpack.c.h.b16 %v2087
        %v2298 = vunpack.c.l.b16 %v2088
        %v2299 = vunpack.c.h.b16 %v2088
        %v2300 = vunpack.c.l.b16 %v2089
        %v2301 = vunpack.c.h.b16 %v2089
        %v2302 = vunpack.c.l.b16 %v2090
        %v2303 = vunpack.c.h.b16 %v2090
        %v2304 = vunpack.c.l.b16 %v2091
        %v2305 = vunpack.c.h.b16 %v2091
        %v2306 = vunpack.c.l.b16 %v2092
        %v2307 = vunpack.c.h.b16 %v2092
        %v2308 = vunpack.c.l.b16 %v2093
        %v2309 = vunpack.c.h.b16 %v2093
        %v2310 = vunpack.c.l.b16 %v2094
        %v2311 = vunpack.c.h.b16 %v2094
        %v2312 = vunpack.c.l.b16 %v2095
        %v2313 = vunpack.c.h.b16 %v2095
        %v2314 = vunpack.c.l.b16 %v2096
        %v2315 = vunpack.c.h.b16 %v2096
        %v2316 = vunpack.c.l.b16 %v2097
        %v2317 = vunpack.c.h.b16 %v2097
        %v2318 = vunpack.c.l.b16 %v2098
        %v2319 = vunpack.c.h.b16 %v2098
        %v2320 = vunpack.c.l.b16 %v2099
        %v2321 = vunpack.c.h.b16 %v2099
        %v2322 = vunpack.c.l.b16 %v2100
        %v2323 = vunpack.c.h.b16 %v2100
        %v2324 = vunpack.c.l.b16 %v2101
        %v2325 = vunpack.c.h.b16 %v2101
        %v2326 = vunpack.c.l.b16 %v2102
        %v2327 = vunpack.c.h.b16 %v2102
        %v2328 = vunpack.c.l.b16 %v2103
        %v2329 = vunpack.c.h.b16 %v2103
        %v2330 = vpack.c.b16 %v2190, %v2186
        %v2331 = vpack.c.b16 %v2191, %v2187
        %v2332 = vpack.c.b16 %v2192, %v2188
        %v2333 = vpack.c.b16 %v2193, %v2189
        %v2334 = vpack.c.b16 %v2198, %v2194
        %v2335 = vpack.c.b16 %v2199, %v2195
        %v2336 = vpack.c.b16 %v2200, %v2196
        %v2337 = vpack.c.b16 %v2201, %v2197
        %v2338 = vpack.c.b16 %v2206, %v2202
        %v2339 = vpack.c.b16 %v2207, %v2203
        %v2340 = vpack.c.b16 %v2208, %v2204
        %v2341 = vpack.c.b16 %v2209, %v2205
        %v2342 = vpack.c.b16 %v2214, %v2210
        %v2343 = vpack.c.b16 %v2215, %v2211
        %v2344 = vpack.c.b16 %v2216, %v2212
        %v2345 = vpack.c.b16 %v2217, %v2213
        %v2346 = vpack.c.b16 %v2222, %v2218
        %v2347 = vpack.c.b16 %v2223, %v2219
        %v2348 = vpack.c.b16 %v2224, %v2220
        %v2349 = vpack.c.b16 %v2225, %v2221
        %v2350 = vpack.c.b16 %v2230, %v2226
        %v2351 = vpack.c.b16 %v2231, %v2227
        %v2352 = vpack.c.b16 %v2232, %v2228
        %v2353 = vpack.c.b16 %v2233, %v2229
        %v2354 = vpack.c.b16 %v2238, %v2234
        %v2355 = vpack.c.b16 %v2239, %v2235
        %v2356 = vpack.c.b16 %v2240, %v2236
        %v2357 = vpack.c.b16 %v2241, %v2237
        %v2358 = vpack.c.b16 %v2246, %v2242
        %v2359 = vpack.c.b16 %v2247, %v2243
        %v2360 = vpack.c.b16 %v2248, %v2244
        %v2361 = vpack.c.b16 %v2249, %v2245
        %v2362 = vpack.c.b16 %v2254, %v2250
        %v2363 = vpack.c.b16 %v2255, %v2251
        %v2364 = vpack.c.b16 %v2256, %v2252
        %v2365 = vpack.c.b16 %v2257, %v2253
        %v2366 = vpack.c.b16 %v2262, %v2258
        %v2367 = vpack.c.b16 %v2263, %v2259
        %v2368 = vpack.c.b16 %v2264, %v2260
        %v2369 = vpack.c.b16 %v2265, %v2261
        %v2370 = vpack.c.b16 %v2270, %v2266
        %v2371 = vpack.c.b16 %v2271, %v2267
        %v2372 = vpack.c.b16 %v2272, %v2268
        %v2373 = vpack.c.b16 %v2273, %v2269
        %v2374 = vpack.c.b16 %v2278, %v2274
        %v2375 = vpack.c.b16 %v2279, %v2275
        %v2376 = vpack.c.b16 %v2280, %v2276
        %v2377 = vpack.c.b16 %v2281, %v2277
        %v2378 = vpack.c.b16 %v2286, %v2282
        %v2379 = vpack.c.b16 %v2287, %v2283
        %v2380 = vpack.c.b16 %v2288, %v2284
        %v2381 = vpack.c.b16 %v2289, %v2285
        %v2382 = vpack.c.b16 %v2294, %v2290
        %v2383 = vpack.c.b16 %v2295, %v2291
        %v2384 = vpack.c.b16 %v2296, %v2292
        %v2385 = vpack.c.b16 %v2297, %v2293
        %v2386 = vpack.c.b16 %v2302, %v2298
        %v2387 = vpack.c.b16 %v2303, %v2299
        %v2388 = vpack.c.b16 %v2304, %v2300
        %v2389 = vpack.c.b16 %v2305, %v2301
        %v2390 = vpack.c.b16 %v2310, %v2306
        %v2391 = vpack.c.b16 %v2311, %v2307
        %v2392 = vpack.c.b16 %v2312, %v2308
        %v2393 = vpack.c.b16 %v2313, %v2309
        %v2394 = vpack.c.b16 %v2318, %v2314
        %v2395 = vpack.c.b16 %v2319, %v2315
        %v2396 = vpack.c.b16 %v2320, %v2316
        %v2397 = vpack.c.b16 %v2321, %v2317
        %v2398 = vpack.c.b16 %v2326, %v2322
        %v2399 = vpack.c.b16 %v2327, %v2323
        %v2400 = vpack.c.b16 %v2328, %v2324
        %v2401 = vpack.c.b16 %v2329, %v2325
        %v2475 = vsel %vm1833, %v2110, 0
        %2477 = vmatprep.subr.bf16.mxu0 %v2331
        %2478 = vmatpush1.bf16.msra.mxu0 %v2330
        %2479 = vmatprep.subr.bf16.mxu0 %v2335
        %2480 = vmatpush1.bf16.msra.mxu0 %v2334
        %2481 = vmatprep.subr.bf16.mxu0 %v2339
        %2482 = vmatpush1.bf16.msra.mxu0 %v2338
        %2483 = vmatprep.subr.bf16.mxu0 %v2343
        %2484 = vmatpush1.bf16.msra.mxu0 %v2342
        %2485 = vmatprep.subr.bf16.mxu0 %v2347
        %2486 = vmatpush1.bf16.msra.mxu0 %v2346
        %2487 = vmatprep.subr.bf16.mxu0 %v2351
        %2488 = vmatpush1.bf16.msra.mxu0 %v2350
        %2489 = vmatprep.subr.bf16.mxu0 %v2355
        %2490 = vmatpush1.bf16.msra.mxu0 %v2354
        %2491 = vmatprep.subr.bf16.mxu0 %v2359
        %2492 = vmatpush1.bf16.msra.mxu0 %v2358
        %2493 = vmatprep.subr.bf16.mxu0 %v2363
        %2494 = vmatpush1.bf16.msra.mxu0 %v2362
        %2495 = vmatprep.subr.bf16.mxu0 %v2367
        %2496 = vmatpush1.bf16.msra.mxu0 %v2366
        %2497 = vmatprep.subr.bf16.mxu0 %v2371
        %2498 = vmatpush1.bf16.msra.mxu0 %v2370
        %2499 = vmatprep.subr.bf16.mxu0 %v2375
        %2500 = vmatpush1.bf16.msra.mxu0 %v2374
        %2501 = vmatprep.subr.bf16.mxu0 %v2379
        %2502 = vmatpush1.bf16.msra.mxu0 %v2378
        %2503 = vmatprep.subr.bf16.mxu0 %v2383
        %2504 = vmatpush1.bf16.msra.mxu0 %v2382
        %2505 = vmatprep.subr.bf16.mxu0 %v2387
        %2506 = vmatpush1.bf16.msra.mxu0 %v2386
        %2507 = vmatprep.subr.bf16.mxu0 %v2391
        %2508 = vmatpush1.bf16.msra.mxu0 %v2390
        %2509 = vmatprep.mubr.bf16.mxu0 %v2108
        %2510 = vmatmul.mubr.bf16.gmra.mrb[0].mxu0 %v2105
        %v2511 = vpop.f32.mrb[0].mxu0
        %v2512 = vadd.f32 0.0, %v2511
        %v2513 = vpop.f32.mrb[0].mxu0
        %v2514 = vadd.f32 0.0, %v2513
        %v2515 = vpop.f32.mrb[0].mxu0
        %v2516 = vpop.f32.mrb[0].mxu0
        %2517 = vdwg.mxu0
        %2518 = vmatprep.subr.bf16.mxu0 %v2395
        %2519 = vmatpush1.bf16.msra.mxu0 %v2394
        %2520 = vmatprep.subr.bf16.mxu0 %v2399
        %2521 = vmatpush1.bf16.msra.mxu0 %v2398
        %2522 = vmatprep.subr.bf16.mxu0 0
        %2523 = vmatpush1.bf16.msra.mxu0 0
        %2524 = vmatprep.subr.bf16.mxu0 0
        %2525 = vmatpush1.bf16.msra.mxu0 0
        %2526 = vmatprep.subr.bf16.mxu0 0
        %2527 = vmatpush1.bf16.msra.mxu0 0
        %2528 = vmatprep.subr.bf16.mxu0 0
        %2529 = vmatpush1.bf16.msra.mxu0 0
        %2530 = vmatprep.subr.bf16.mxu0 0
        %2531 = vmatpush1.bf16.msra.mxu0 0
        %2532 = vmatprep.subr.bf16.mxu0 0
        %2533 = vmatpush1.bf16.msra.mxu0 0
        %2534 = vmatprep.subr.bf16.mxu0 0
        %2535 = vmatpush1.bf16.msra.mxu0 0
        %2536 = vmatprep.subr.bf16.mxu0 0
        %2537 = vmatpush1.bf16.msra.mxu0 0
        %2538 = vmatprep.subr.bf16.mxu0 0
        %2539 = vmatpush1.bf16.msra.mxu0 0
        %2540 = vmatprep.subr.bf16.mxu0 0
        %2541 = vmatpush1.bf16.msra.mxu0 0
        %2542 = vmatprep.subr.bf16.mxu0 0
        %2543 = vmatpush1.bf16.msra.mxu0 0
        %2544 = vmatprep.subr.bf16.mxu0 0
        %2545 = vmatpush1.bf16.msra.mxu0 0
        %2546 = vmatprep.subr.bf16.mxu0 0
        %2547 = vmatpush1.bf16.msra.mxu0 0
        %2548 = vmatprep.subr.bf16.mxu0 0
        %2549 = vmatpush1.bf16.msra.mxu0 0
        %2550 = vmatprep.mubr.bf16.mxu0 0
        %2551 = vmatmul.mubr.bf16.gmra.mrb[0].mxu0 %v2475
        %v2552 = vpop.f32.mrb[0].mxu0
        %v2553 = vadd.f32 %v2512, %v2552
        %v2554 = vpop.f32.mrb[0].mxu0
        %v2555 = vadd.f32 %v2514, %v2554
        %v2556 = vpop.f32.mrb[0].mxu0
        %v2557 = vpop.f32.mrb[0].mxu0
        %2558 = vdwg.mxu0
        %2559 = vmatprep.subr.bf16.mxu0 %v2333
        %2560 = vmatpush1.bf16.msra.mxu0 %v2332
        %2561 = vmatprep.subr.bf16.mxu0 %v2337
        %2562 = vmatpush1.bf16.msra.mxu0 %v2336
        %2563 = vmatprep.subr.bf16.mxu0 %v2341
        %2564 = vmatpush1.bf16.msra.mxu0 %v2340
        %2565 = vmatprep.subr.bf16.mxu0 %v2345
        %2566 = vmatpush1.bf16.msra.mxu0 %v2344
        %2567 = vmatprep.subr.bf16.mxu0 %v2349
        %2568 = vmatpush1.bf16.msra.mxu0 %v2348
        %2569 = vmatprep.subr.bf16.mxu0 %v2353
        %2570 = vmatpush1.bf16.msra.mxu0 %v2352
        %2571 = vmatprep.subr.bf16.mxu0 %v2357
        %2572 = vmatpush1.bf16.msra.mxu0 %v2356
        %2573 = vmatprep.subr.bf16.mxu0 %v2361
        %2574 = vmatpush1.bf16.msra.mxu0 %v2360
        %2575 = vmatprep.subr.bf16.mxu0 %v2365
        %2576 = vmatpush1.bf16.msra.mxu0 %v2364
        %2577 = vmatprep.subr.bf16.mxu0 %v2369
        %2578 = vmatpush1.bf16.msra.mxu0 %v2368
        %2579 = vmatprep.subr.bf16.mxu0 %v2373
        %2580 = vmatpush1.bf16.msra.mxu0 %v2372
        %2581 = vmatprep.subr.bf16.mxu0 %v2377
        %2582 = vmatpush1.bf16.msra.mxu0 %v2376
        %2583 = vmatprep.subr.bf16.mxu0 %v2381
        %2584 = vmatpush1.bf16.msra.mxu0 %v2380
        %2585 = vmatprep.subr.bf16.mxu0 %v2385
        %2586 = vmatpush1.bf16.msra.mxu0 %v2384
        %2587 = vmatprep.subr.bf16.mxu0 %v2389
        %2588 = vmatpush1.bf16.msra.mxu0 %v2388
        %2589 = vmatprep.subr.bf16.mxu0 %v2393
        %2590 = vmatpush1.bf16.msra.mxu0 %v2392
        %2591 = vmatprep.mubr.bf16.mxu0 %v2108
        %2592 = vmatmul.mubr.bf16.gmra.mrb[0].mxu0 %v2105
        %v2593 = vpop.f32.mrb[0].mxu0
        %v2594 = vadd.f32 0.0, %v2593
        %v2595 = vpop.f32.mrb[0].mxu0
        %v2596 = vadd.f32 0.0, %v2595
        %v2597 = vpop.f32.mrb[0].mxu0
        %v2598 = vpop.f32.mrb[0].mxu0
        %2599 = vdwg.mxu0
        %2600 = vmatprep.subr.bf16.mxu0 %v2397
        %2601 = vmatpush1.bf16.msra.mxu0 %v2396
        %2602 = vmatprep.subr.bf16.mxu0 %v2401
        %2603 = vmatpush1.bf16.msra.mxu0 %v2400
        %2604 = vmatprep.subr.bf16.mxu0 0
        %2605 = vmatpush1.bf16.msra.mxu0 0
        %2606 = vmatprep.subr.bf16.mxu0 0
        %2607 = vmatpush1.bf16.msra.mxu0 0
        %2608 = vmatprep.subr.bf16.mxu0 0
        %2609 = vmatpush1.bf16.msra.mxu0 0
        %2610 = vmatprep.subr.bf16.mxu0 0
        %2611 = vmatpush1.bf16.msra.mxu0 0
        %2612 = vmatprep.subr.bf16.mxu0 0
        %2613 = vmatpush1.bf16.msra.mxu0 0
        %2614 = vmatprep.subr.bf16.mxu0 0
        %2615 = vmatpush1.bf16.msra.mxu0 0
        %2616 = vmatprep.subr.bf16.mxu0 0
        %2617 = vmatpush1.bf16.msra.mxu0 0
        %2618 = vmatprep.subr.bf16.mxu0 0
        %2619 = vmatpush1.bf16.msra.mxu0 0
        %2620 = vmatprep.subr.bf16.mxu0 0
        %2621 = vmatpush1.bf16.msra.mxu0 0
        %2622 = vmatprep.subr.bf16.mxu0 0
        %2623 = vmatpush1.bf16.msra.mxu0 0
        %2624 = vmatprep.subr.bf16.mxu0 0
        %2625 = vmatpush1.bf16.msra.mxu0 0
        %2626 = vmatprep.subr.bf16.mxu0 0
        %2627 = vmatpush1.bf16.msra.mxu0 0
        %2628 = vmatprep.subr.bf16.mxu0 0
        %2629 = vmatpush1.bf16.msra.mxu0 0
        %2630 = vmatprep.subr.bf16.mxu0 0
        %2631 = vmatpush1.bf16.msra.mxu0 0
        %2632 = vmatprep.mubr.bf16.mxu0 0
        %2633 = vmatmul.mubr.bf16.gmra.mrb[0].mxu0 %v2475
        %v2634 = vpop.f32.mrb[0].mxu0
        %v2635 = vadd.f32 %v2594, %v2634
        %v2636 = vpop.f32.mrb[0].mxu0
        %v2637 = vadd.f32 %v2596, %v2636
        %v2638 = vpop.f32.mrb[0].mxu0
        %v2639 = vpop.f32.mrb[0].mxu0
        %2640 = vdwg.mxu0
        %v2645 = vcombine.low %v2553, %v2555
        %v2646 = vcombine.low %v2635, %v2637
        %v2648 = vunpack.c.l.s4 1966171168
        %v2649 = vunpack.c.0.s8 %v2648
        %v2650 = vlaneseq
        %v2651 = vshrl.u32 %v2650, 7
        %v2652 = vsub.s32 %v2649, %v2651
        %v2653 = vrot.slane %v2645, %v2652
        %v2655 = vunpack.c.l.s4 1966171168
        %v2656 = vunpack.c.0.s8 %v2655
        %v2657 = vlaneseq
        %v2658 = vshrl.u32 %v2657, 7
        %v2659 = vsub.s32 %v2656, %v2658
        %v2660 = vrot.slane %v2646, %v2659
        %v2661 = vcombine.low %v2653, %v2660
        %v2663 = vunpack.c.l.s4 1966171168
        %v2664 = vunpack.c.0.s8 %v2663
        %v2665 = vlaneseq
        %v2666 = vshrl.u32 %v2665, 7
        %v2667 = vsub.s32 %v2664, %v2666
        %v2668 = vrot.slane %v2661, %v2667
        %v2670 = vadd.f32 %v2030, %v2668
        %v2671 = vmax.f32 %v2670, 0.0
        %v2673 = vlaneseq
        %v2674 = vshrl.u32 %v2673, 7
        %v2675 = vsub.s32 0, %v2674
        %v2676 = vrot.slane %v2671, %v2675
        %v2677 = vlaneseq
        %v2678 = vshrl.u32 %v2677, 7
        %v2679 = vsub.s32 1, %v2678
        %v2680 = vrot.slane %v2671, %v2679
        %v2681 = vlaneseq
        %v2682 = vshrl.u32 %v2681, 7
        %v2683 = vsub.s32 2, %v2682
        %v2684 = vrot.slane %v2671, %v2683
        %v2685 = vlaneseq
        %v2686 = vshrl.u32 %v2685, 7
        %v2687 = vsub.s32 3, %v2686
        %v2688 = vrot.slane %v2671, %v2687
        %v2693 = vpack.c.bf16 %v2676, %v2676
        %v2694 = vpack.c.bf16 %v2680, %v2680
        %v2695 = vpack.c.bf16 %v2684, %v2684
        %v2696 = vpack.c.bf16 %v2688, %v2688
        %v2697 = vld [vmem:[%s5] sm:$0xf]
        %v2698 = vld [vmem:[%s5 + $0x4] sm:$0xf]
        %v2699 = vld [vmem:[%s5 + $0x8] sm:$0xf]
        %v2700 = vld [vmem:[%s5 + $0xc] sm:$0xf]
        %v2701 = vld [vmem:[%s5 + $0x10] sm:$0xf]
        %v2702 = vld [vmem:[%s5 + $0x14] sm:$0xf]
        %v2703 = vld [vmem:[%s5 + $0x18] sm:$0xf]
        %v2704 = vld [vmem:[%s5 + $0x1c] sm:$0xf]
        %v2705 = vld [vmem:[%s5 + $0x20] sm:$0xf]
        %v2706 = vld [vmem:[%s5 + $0x24] sm:$0xf]
        %v2707 = vld [vmem:[%s5 + $0x28] sm:$0xf]
        %v2708 = vld [vmem:[%s5 + $0x2c] sm:$0xf]
        %v2709 = vld [vmem:[%s5 + $0x30] sm:$0xf]
        %v2710 = vld [vmem:[%s5 + $0x34] sm:$0xf]
        %v2711 = vld [vmem:[%s5 + $0x38] sm:$0xf]
        %v2712 = vld [vmem:[%s5 + $0x3c] sm:$0xf]
        %v2713 = vld [vmem:[%s5 + $0x40] sm:$0xf]
        %v2714 = vld [vmem:[%s5 + $0x44] sm:$0xf]
        %v2715 = vld [vmem:[%s5 + $0x48] sm:$0xf]
        %v2716 = vld [vmem:[%s5 + $0x4c] sm:$0xf]
        %v2717 = vld [vmem:[%s5 + $0x50] sm:$0xf]
        %v2718 = vld [vmem:[%s5 + $0x54] sm:$0xf]
        %v2719 = vld [vmem:[%s5 + $0x58] sm:$0xf]
        %v2720 = vld [vmem:[%s5 + $0x5c] sm:$0xf]
        %v2721 = vld [vmem:[%s5 + $0x60] sm:$0xf]
        %v2722 = vld [vmem:[%s5 + $0x64] sm:$0xf]
        %v2723 = vld [vmem:[%s5 + $0x68] sm:$0xf]
        %v2724 = vld [vmem:[%s5 + $0x6c] sm:$0xf]
        %v2725 = vld [vmem:[%s5 + $0x70] sm:$0xf]
        %v2726 = vld [vmem:[%s5 + $0x74] sm:$0xf]
        %v2727 = vld [vmem:[%s5 + $0x78] sm:$0xf]
        %v2728 = vld [vmem:[%s5 + $0x7c] sm:$0xf]
        %v2729 = vld [vmem:[%s5 + $0x80] sm:$0xf]
        %v2730 = vld [vmem:[%s5 + $0x84] sm:$0xf]
        %v2731 = vld [vmem:[%s5 + $0x88] sm:$0xf]
        %v2732 = vld [vmem:[%s5 + $0x8c] sm:$0xf]
        %v2733 = vld [vmem:[%s5 + $0x90] sm:$0xf]
        %v2734 = vld [vmem:[%s5 + $0x94] sm:$0xf]
        %v2735 = vld [vmem:[%s5 + $0x98] sm:$0xf]
        %v2736 = vld [vmem:[%s5 + $0x9c] sm:$0xf]
        %v2737 = vld [vmem:[%s5 + $0xa0] sm:$0xf]
        %v2738 = vld [vmem:[%s5 + $0xa4] sm:$0xf]
        %v2739 = vld [vmem:[%s5 + $0xa8] sm:$0xf]
        %v2740 = vld [vmem:[%s5 + $0xac] sm:$0xf]
        %v2741 = vld [vmem:[%s5 + $0xb0] sm:$0xf]
        %v2742 = vld [vmem:[%s5 + $0xb4] sm:$0xf]
        %v2743 = vld [vmem:[%s5 + $0xb8] sm:$0xf]
        %v2744 = vld [vmem:[%s5 + $0xbc] sm:$0xf]
        %v2745 = vld [vmem:[%s5 + $0xc0] sm:$0xf]
        %v2746 = vld [vmem:[%s5 + $0xc4] sm:$0xf]
        %v2747 = vld [vmem:[%s5 + $0xc8] sm:$0xf]
        %v2748 = vld [vmem:[%s5 + $0xcc] sm:$0xf]
        %v2749 = vld [vmem:[%s5 + $0xd0] sm:$0xf]
        %v2750 = vld [vmem:[%s5 + $0xd4] sm:$0xf]
        %v2751 = vld [vmem:[%s5 + $0xd8] sm:$0xf]
        %v2752 = vld [vmem:[%s5 + $0xdc] sm:$0xf]
        %v2753 = vld [vmem:[%s5 + $0xe0] sm:$0xf]
        %v2754 = vld [vmem:[%s5 + $0xe4] sm:$0xf]
        %v2755 = vld [vmem:[%s5 + $0xe8] sm:$0xf]
        %v2756 = vld [vmem:[%s5 + $0xec] sm:$0xf]
        %v2757 = vld [vmem:[%s5 + $0xf0] sm:$0xf]
        %v2758 = vld [vmem:[%s5 + $0xf4] sm:$0xf]
        %v2759 = vld [vmem:[%s5 + $0xf8] sm:$0xf]
        %v2760 = vld [vmem:[%s5 + $0xfc] sm:$0xf]
        %v2761 = vld [vmem:[%s6] sm:$0x1]
        %v2826 = vunpack.c.l.b16 %v2697
        %v2827 = vunpack.c.l.b16 %v2698
        %v2828 = vunpack.c.l.b16 %v2699
        %v2829 = vunpack.c.l.b16 %v2700
        %v2830 = vunpack.c.l.b16 %v2701
        %v2831 = vunpack.c.l.b16 %v2702
        %v2832 = vunpack.c.l.b16 %v2703
        %v2833 = vunpack.c.l.b16 %v2704
        %v2834 = vunpack.c.l.b16 %v2705
        %v2835 = vunpack.c.l.b16 %v2706
        %v2836 = vunpack.c.l.b16 %v2707
        %v2837 = vunpack.c.l.b16 %v2708
        %v2838 = vunpack.c.l.b16 %v2709
        %v2839 = vunpack.c.l.b16 %v2710
        %v2840 = vunpack.c.l.b16 %v2711
        %v2841 = vunpack.c.l.b16 %v2712
        %v2842 = vunpack.c.l.b16 %v2713
        %v2843 = vunpack.c.l.b16 %v2714
        %v2844 = vunpack.c.l.b16 %v2715
        %v2845 = vunpack.c.l.b16 %v2716
        %v2846 = vunpack.c.l.b16 %v2717
        %v2847 = vunpack.c.l.b16 %v2718
        %v2848 = vunpack.c.l.b16 %v2719
        %v2849 = vunpack.c.l.b16 %v2720
        %v2850 = vunpack.c.l.b16 %v2721
        %v2851 = vunpack.c.l.b16 %v2722
        %v2852 = vunpack.c.l.b16 %v2723
        %v2853 = vunpack.c.l.b16 %v2724
        %v2854 = vunpack.c.l.b16 %v2725
        %v2855 = vunpack.c.l.b16 %v2726
        %v2856 = vunpack.c.l.b16 %v2727
        %v2857 = vunpack.c.l.b16 %v2728
        %v2858 = vunpack.c.l.b16 %v2729
        %v2859 = vunpack.c.l.b16 %v2730
        %v2860 = vunpack.c.l.b16 %v2731
        %v2861 = vunpack.c.l.b16 %v2732
        %v2862 = vunpack.c.l.b16 %v2733
        %v2863 = vunpack.c.l.b16 %v2734
        %v2864 = vunpack.c.l.b16 %v2735
        %v2865 = vunpack.c.l.b16 %v2736
        %v2866 = vunpack.c.l.b16 %v2737
        %v2867 = vunpack.c.l.b16 %v2738
        %v2868 = vunpack.c.l.b16 %v2739
        %v2869 = vunpack.c.l.b16 %v2740
        %v2870 = vunpack.c.l.b16 %v2741
        %v2871 = vunpack.c.l.b16 %v2742
        %v2872 = vunpack.c.l.b16 %v2743
        %v2873 = vunpack.c.l.b16 %v2744
        %v2874 = vunpack.c.l.b16 %v2745
        %v2875 = vunpack.c.l.b16 %v2746
        %v2876 = vunpack.c.l.b16 %v2747
        %v2877 = vunpack.c.l.b16 %v2748
        %v2878 = vunpack.c.l.b16 %v2749
        %v2879 = vunpack.c.l.b16 %v2750
        %v2880 = vunpack.c.l.b16 %v2751
        %v2881 = vunpack.c.l.b16 %v2752
        %v2882 = vunpack.c.l.b16 %v2753
        %v2883 = vunpack.c.l.b16 %v2754
        %v2884 = vunpack.c.l.b16 %v2755
        %v2885 = vunpack.c.l.b16 %v2756
        %v2886 = vunpack.c.l.b16 %v2757
        %v2887 = vunpack.c.l.b16 %v2758
        %v2888 = vunpack.c.l.b16 %v2759
        %v2889 = vunpack.c.l.b16 %v2760
        %v2890 = vpack.c.b16 %v2827, %v2826
        %v2891 = vpack.c.b16 %v2829, %v2828
        %v2892 = vpack.c.b16 %v2831, %v2830
        %v2893 = vpack.c.b16 %v2833, %v2832
        %v2894 = vpack.c.b16 %v2835, %v2834
        %v2895 = vpack.c.b16 %v2837, %v2836
        %v2896 = vpack.c.b16 %v2839, %v2838
        %v2897 = vpack.c.b16 %v2841, %v2840
        %v2898 = vpack.c.b16 %v2843, %v2842
        %v2899 = vpack.c.b16 %v2845, %v2844
        %v2900 = vpack.c.b16 %v2847, %v2846
        %v2901 = vpack.c.b16 %v2849, %v2848
        %v2902 = vpack.c.b16 %v2851, %v2850
        %v2903 = vpack.c.b16 %v2853, %v2852
        %v2904 = vpack.c.b16 %v2855, %v2854
        %v2905 = vpack.c.b16 %v2857, %v2856
        %v2906 = vpack.c.b16 %v2859, %v2858
        %v2907 = vpack.c.b16 %v2861, %v2860
        %v2908 = vpack.c.b16 %v2863, %v2862
        %v2909 = vpack.c.b16 %v2865, %v2864
        %v2910 = vpack.c.b16 %v2867, %v2866
        %v2911 = vpack.c.b16 %v2869, %v2868
        %v2912 = vpack.c.b16 %v2871, %v2870
        %v2913 = vpack.c.b16 %v2873, %v2872
        %v2914 = vpack.c.b16 %v2875, %v2874
        %v2915 = vpack.c.b16 %v2877, %v2876
        %v2916 = vpack.c.b16 %v2879, %v2878
        %v2917 = vpack.c.b16 %v2881, %v2880
        %v2918 = vpack.c.b16 %v2883, %v2882
        %v2919 = vpack.c.b16 %v2885, %v2884
        %v2920 = vpack.c.b16 %v2887, %v2886
        %v2921 = vpack.c.b16 %v2889, %v2888
        %2954 = vmatprep.subr.bf16.mxu0 0
        %2955 = vmatpush1.bf16.msra.mxu0 %v2890
        %2956 = vmatprep.subr.bf16.mxu0 0
        %2957 = vmatpush1.bf16.msra.mxu0 %v2891
        %2958 = vmatprep.subr.bf16.mxu0 0
        %2959 = vmatpush1.bf16.msra.mxu0 %v2892
        %2960 = vmatprep.subr.bf16.mxu0 0
        %2961 = vmatpush1.bf16.msra.mxu0 %v2893
        %2962 = vmatprep.subr.bf16.mxu0 0
        %2963 = vmatpush1.bf16.msra.mxu0 %v2894
        %2964 = vmatprep.subr.bf16.mxu0 0
        %2965 = vmatpush1.bf16.msra.mxu0 %v2895
        %2966 = vmatprep.subr.bf16.mxu0 0
        %2967 = vmatpush1.bf16.msra.mxu0 %v2896
        %2968 = vmatprep.subr.bf16.mxu0 0
        %2969 = vmatpush1.bf16.msra.mxu0 %v2897
        %2970 = vmatprep.subr.bf16.mxu0 0
        %2971 = vmatpush1.bf16.msra.mxu0 %v2898
        %2972 = vmatprep.subr.bf16.mxu0 0
        %2973 = vmatpush1.bf16.msra.mxu0 %v2899
        %2974 = vmatprep.subr.bf16.mxu0 0
        %2975 = vmatpush1.bf16.msra.mxu0 %v2900
        %2976 = vmatprep.subr.bf16.mxu0 0
        %2977 = vmatpush1.bf16.msra.mxu0 %v2901
        %2978 = vmatprep.subr.bf16.mxu0 0
        %2979 = vmatpush1.bf16.msra.mxu0 %v2902
        %2980 = vmatprep.subr.bf16.mxu0 0
        %2981 = vmatpush1.bf16.msra.mxu0 %v2903
        %2982 = vmatprep.subr.bf16.mxu0 0
        %2983 = vmatpush1.bf16.msra.mxu0 %v2904
        %2984 = vmatprep.subr.bf16.mxu0 0
        %2985 = vmatpush1.bf16.msra.mxu0 %v2905
        %2986 = vmatprep.mubr.bf16.mxu0 %v2694
        %2987 = vmatmul.mubr.bf16.gmra.mrb[0].mxu0 %v2693
        %v2988 = vpop.f32.mrb[0].mxu0
        %v2989 = vadd.f32 %v2761, %v2988
        %v2990 = vpop.f32.mrb[0].mxu0
        %v2991 = vpop.f32.mrb[0].mxu0
        %v2992 = vpop.f32.mrb[0].mxu0
        %2993 = vdwg.mxu0
        %2994 = vmatprep.subr.bf16.mxu0 0
        %2995 = vmatpush1.bf16.msra.mxu0 %v2906
        %2996 = vmatprep.subr.bf16.mxu0 0
        %2997 = vmatpush1.bf16.msra.mxu0 %v2907
        %2998 = vmatprep.subr.bf16.mxu0 0
        %2999 = vmatpush1.bf16.msra.mxu0 %v2908
        %3000 = vmatprep.subr.bf16.mxu0 0
        %3001 = vmatpush1.bf16.msra.mxu0 %v2909
        %3002 = vmatprep.subr.bf16.mxu0 0
        %3003 = vmatpush1.bf16.msra.mxu0 %v2910
        %3004 = vmatprep.subr.bf16.mxu0 0
        %3005 = vmatpush1.bf16.msra.mxu0 %v2911
        %3006 = vmatprep.subr.bf16.mxu0 0
        %3007 = vmatpush1.bf16.msra.mxu0 %v2912
        %3008 = vmatprep.subr.bf16.mxu0 0
        %3009 = vmatpush1.bf16.msra.mxu0 %v2913
        %3010 = vmatprep.subr.bf16.mxu0 0
        %3011 = vmatpush1.bf16.msra.mxu0 %v2914
        %3012 = vmatprep.subr.bf16.mxu0 0
        %3013 = vmatpush1.bf16.msra.mxu0 %v2915
        %3014 = vmatprep.subr.bf16.mxu0 0
        %3015 = vmatpush1.bf16.msra.mxu0 %v2916
        %3016 = vmatprep.subr.bf16.mxu0 0
        %3017 = vmatpush1.bf16.msra.mxu0 %v2917
        %3018 = vmatprep.subr.bf16.mxu0 0
        %3019 = vmatpush1.bf16.msra.mxu0 %v2918
        %3020 = vmatprep.subr.bf16.mxu0 0
        %3021 = vmatpush1.bf16.msra.mxu0 %v2919
        %3022 = vmatprep.subr.bf16.mxu0 0
        %3023 = vmatpush1.bf16.msra.mxu0 %v2920
        %3024 = vmatprep.subr.bf16.mxu0 0
        %3025 = vmatpush1.bf16.msra.mxu0 %v2921
        %3026 = vmatprep.mubr.bf16.mxu0 %v2696
        %3027 = vmatmul.mubr.bf16.gmra.mrb[0].mxu0 %v2695
        %v3028 = vpop.f32.mrb[0].mxu0
        %v3029 = vadd.f32 %v2989, %v3028
        %v3030 = vpop.f32.mrb[0].mxu0
        %v3031 = vpop.f32.mrb[0].mxu0
        %v3032 = vpop.f32.mrb[0].mxu0
        %3033 = vdwg.mxu0
        %v3034 = vmul.f32 %v3029, %v3029
        %vm3035 = vcmask 1040384
        %v3036 = vsel %vm3035, %v3034, 0.0
        %3037 = vadd.xlane.f32.xlu0 %v3036
        %v3038 = vpop.xlane.xlu0 %3037
        %v3039 = vmax.f32 %v3038, 1e-24
        %v3040 = vrsqrt.pop %v3039
        %v3041 = vmul.f32 %v3029, %v3040
        %3042 = vst [vmem:[%s285] sm:$0x1] %v3041
        %s3043 = sand.u32 %s182, 1
        %s3044 = scalar_lea.sflag [#allocation4], %s3043
        %s3045 = sand.u32 %s182, 1
        %s3046 = scalar_lea.vmem [#allocation5], %s3045
        // Predicated region
        $region53: #{forward.1} parent=47 // pred_check
          %p3047 = pneg %p192
        $region54: #{forward.1} parent=47 // pred_check_branch
          %3049 = sbr.rel (%p3047) target = $region56
        $region55: #{forward.1} parent=47 // pred_region
          %s3051 = ssub.s32 16, 16
          %3052 = vsyncadd %s3044, %s3051
          %s3053 = smul.addr %s22, 16
          %s3054 = scalar_lea.hbm %s7, %s3053
          %s3056 = sshll.u32 %s3046, 4
          %s3057 = int_to_ptr.vmem [resolvable:$true] %s3056
          %3059 = dma.vmem_to_hbm [thread:$0]  %s3057, 16, %s3054, %s3044
        $region56: #{forward.1} parent=47 // pred_fallthru
          _
      $region48: #{forward.1} parent=5 // pred_fallthru
        _
      %p3060 = scmp.le.s32.totalorder 2, %s17
      // Predicated region
      $region57: #{forward.1} parent=5 // pred_check
        %p3061 = pneg %p3060
      $region58: #{forward.1} parent=5 // pred_check_branch
        %3063 = sbr.rel (%p3061) target = $region60
      $region59: #{forward.1} parent=5 // pred_region
        %s3064 = ssub.s32 %s17, 2
        // Predicated region
        $region61: #{forward.1} parent=59 // pred_check
          %p3065 = pneg %p198
        $region62: #{forward.1} parent=59 // pred_check_branch
          %3067 = sbr.rel (%p3065) target = $region64
        $region63: #{forward.1} parent=59 // pred_region
          %s3068 = sand.u32 %s183, 1
          %s3069 = scalar_lea.sflag [#allocation4], %s3068
          %s3070 = sand.u32 %s183, 1
          %s3071 = scalar_lea.vmem [#allocation5], %s3070
          %3072 = dma.done %s3069, 16
        $region64: #{forward.1} parent=59 // pred_fallthru
          _
      $region60: #{forward.1} parent=5 // pred_fallthru
        _
    $region6: #{forward.1} parent=1 // loop_footer
      %s21 = sadd.s32 1, %s17
    $region7: #{forward.1} parent=1 // loop_footer_branch
      %16 = sbr.rel target = $region3
    $region8: #{forward.1} parent=1 // loop_exit
      _
    %3073 = vsyncpa [#allocation3], 1
    %s3074 = scalar_lea.sflag [#allocation3], 1
    %3075 = vsyncpa %s3074, 1
    %3076 = vsyncpa [#allocation4], 1
    %s3077 = scalar_lea.sflag [#allocation4], 1
    %3078 = vsyncpa %s3077, 1

</llo_original>
